<compile_context>
chip_gen: v5e
topology: v5e:2x2
jax: 0.10.0
libtpu: 0.0.40
codegen_flags: <defaults>
</compile_context>

<pallas_src>
import functools

import jax
import jax.numpy as jnp
import numpy as np
from jax.experimental import pallas as pl
from jax.experimental.pallas import tpu as pltpu


# ------------------------------ fused kernel --------------------------------
def _attention_kernel(x_ref, wqkv_ref, wproj_ref, bias_ref, out_ref, attn_ref,
                      *, num_heads, head_dim, block_b, seq_len, dim, scale):
    Bt, N, C, H, hd = block_b, seq_len, dim, num_heads, head_dim

    # Fused QKV projection for every row of this block: (Bt*N, C) @ (C, 3C).
    xb = x_ref[...].reshape(Bt * N, C).astype(jnp.bfloat16)
    qkv = jnp.dot(xb, wqkv_ref[...], preferred_element_type=jnp.float32)

    ctx_rows = []                                    # head-major ctx per batch row-slab
    for b in range(Bt):                              # static, unrolled at trace time
        r0 = b * N
        q_b = qkv[r0:r0 + N, 0 * C:1 * C]            # (N, C) == (N, H*hd)
        k_b = qkv[r0:r0 + N, 1 * C:2 * C]
        v_b = qkv[r0:r0 + N, 2 * C:3 * C]
        head_ctx = []
        for h in range(H):                           # static, unrolled
            c0 = h * hd
            # scale applied to q (N, hd) instead of to s (N, N)
            q = (q_b[:, c0:c0 + hd] * scale).astype(jnp.bfloat16)
            k = k_b[:, c0:c0 + hd].astype(jnp.bfloat16)
            v = v_b[:, c0:c0 + hd].astype(jnp.bfloat16)

            # scores: contract on the last axis of both (no explicit transpose)
            s = jax.lax.dot_general(q, k, (((1,), (1,)), ((), ())),
                                    preferred_element_type=jnp.float32)   # (N, N)

            # softmax entirely in f32 (VPU/EUP path; bf16 only feeds the MXU)
            m = jnp.max(s, axis=-1, keepdims=True)
            e = jnp.exp(s - m)
            p = e * pl.reciprocal(jnp.sum(e, axis=-1, keepdims=True), approx=True)

            attn_ref[b, h] = p                                            # f32 attn map

            head_ctx.append(jnp.dot(p.astype(jnp.bfloat16), v,
                                    preferred_element_type=jnp.float32))  # (N, hd)
        ctx_rows.append(jnp.concatenate(head_ctx, axis=-1))               # (N, C)

    # One output projection per grid step, contraction K = C, bias added once.
    ctx = jnp.concatenate(ctx_rows, axis=0).astype(jnp.bfloat16)          # (Bt*N, C)
    out = jnp.dot(ctx, wproj_ref[...], preferred_element_type=jnp.float32)
    out = out + bias_ref[...]                                             # (1, C) broadcast
    out_ref[...] = out.reshape(Bt, N, C)


def attention_forward(x, w_qkv, w_proj, b_proj, *, num_heads, block_b=None):
    """x: (B, N, C); w_qkv: (C, 3C); w_proj: (C, C); b_proj: (1, C)."""
    B, N, C = x.shape
    assert C % num_heads == 0
    hd = C // num_heads
    scale = float(hd) ** -0.5

    if block_b is None:
        # Fold batches into a grid step until ~256 rows feed the MXU (divisor of B).
        target = max(1, -(-256 // N))
        block_b = 1
        for d in range(1, B + 1):
            if B % d == 0 and d <= target:
                block_b = d
    assert B % block_b == 0
    nb = B // block_b

    # bf16 MXU operands / half-width weight DMA; accumulation stays f32.
    wqkv_bf = w_qkv.astype(jnp.bfloat16)
    wproj_bf = w_proj.astype(jnp.bfloat16)

    kernel = functools.partial(
        _attention_kernel, num_heads=num_heads, head_dim=hd, block_b=block_b,
        seq_len=N, dim=C, scale=scale)

    grid_spec = pltpu.PrefetchScalarGridSpec(
        num_scalar_prefetch=0,
        grid=(nb,),
        in_specs=[
            pl.BlockSpec((block_b, N, C), lambda i: (i, 0, 0)),        # x rows
            pl.BlockSpec((C, 3 * C), lambda i: (0, 0)),                # W_qkv (VMEM-resident)
            pl.BlockSpec((C, C), lambda i: (0, 0)),                    # W_proj (VMEM-resident)
            pl.BlockSpec((1, C), lambda i: (0, 0)),                    # proj bias
        ],
        out_specs=(
            pl.BlockSpec((block_b, N, C), lambda i: (i, 0, 0)),        # output
            pl.BlockSpec((block_b, num_heads, N, N),
                         lambda i: (i, 0, 0, 0)),                      # attention maps
        ),
    )

    out, attn = pl.pallas_call(
        kernel,
        grid_spec=grid_spec,
        out_shape=(jax.ShapeDtypeStruct((B, N, C), jnp.float32),
                   jax.ShapeDtypeStruct((B, num_heads, N, N), jnp.float32)),
        compiler_params=pltpu.CompilerParams(
            dimension_semantics=("parallel",)),
    )(x, wqkv_bf, wproj_bf, b_proj)
    return out, attn


# ------------------- parameter init (PyTorch Linear layout) ------------------
def init_params(key, dim):
    """W_qkv: (dim, 3*dim) for x @ W, W_proj: (dim, dim), b_proj: (1, dim)."""
    k1, k2, k3 = jax.random.split(key, 3)
    bound = 1.0 / np.sqrt(dim)
    w_qkv = jax.random.uniform(k1, (dim, 3 * dim), jnp.float32, -bound, bound)
    w_proj = jax.random.uniform(k2, (dim, dim), jnp.float32, -bound, bound)
    b_proj = jax.random.uniform(k3, (1, dim), jnp.float32, -bound, bound)
    return w_qkv, w_proj, b_proj


# ------------------------------ pure-JAX reference ---------------------------
def reference(x, w_qkv, w_proj, b_proj, num_heads):
    """Mirrors the PyTorch forward exactly (with W stored transposed for x@W)."""
    B, N, C = x.shape
    hd = C // num_heads
    scale = float(hd) ** -0.5
    qkv = (x @ w_qkv).reshape(B, N, 3, num_heads, hd).transpose(2, 0, 3, 1, 4)
    q, k, v = qkv[0], qkv[1], qkv[2]                                    # (B, H, N, hd)
    attn = jax.nn.softmax((q @ jnp.swapaxes(k, -2, -1)) * scale, axis=-1)
    ctx = (attn @ v).transpose(0, 2, 1, 3).reshape(B, N, C)
    out = ctx @ w_proj + b_proj
    return out, attn


if __name__ == "__main__":
    B, N = 2, 16
    NUM_HEADS = 3
    DIM = 192                      # head_dim = 64, divisible by num_heads = 3

    key = jax.random.PRNGKey(0)
    kx, kp = jax.random.split(key)
    x = jax.random.normal(kx, (B, N, DIM), jnp.float32)
    w_qkv, w_proj, b_proj = init_params(kp, DIM)

    out, attn = attention_forward(x, w_qkv, w_proj, b_proj, num_heads=NUM_HEADS)
    out, attn = jax.block_until_ready((out, attn))
    assert out.shape == (B, N, DIM), out.shape
    assert attn.shape == (B, NUM_HEADS, N, N), attn.shape

    ref_out, ref_attn = reference(x, w_qkv, w_proj, b_proj, NUM_HEADS)
    np.testing.assert_allclose(np.asarray(attn), np.asarray(ref_attn),
                               atol=2e-2, rtol=2e-2)
    np.testing.assert_allclose(np.asarray(out), np.asarray(ref_out),
                               atol=2e-2, rtol=2e-2)

    print("KERNEL_OK")
</pallas_src>

<mosaic_0001>
module attributes {stable_mosaic.version = 11 : i64} {
  func.func @_attention_kernel(%arg0: i32, %arg1: memref<2x16x192xf32, #tpu.memory_space<vmem>>, %arg2: memref<192x576xbf16, #tpu.memory_space<vmem>>, %arg3: memref<192x192xbf16, #tpu.memory_space<vmem>>, %arg4: memref<1x192xf32, #tpu.memory_space<vmem>>, %arg5: memref<2x16x192xf32, #tpu.memory_space<vmem>>, %arg6: memref<2x3x16x16xf32, #tpu.memory_space<vmem>>) attributes {dimension_semantics = [#tpu.dimension_semantics<parallel>], iteration_bounds = array<i64: 1>, scalar_prefetch = 0 : i64, scratch_operands = 0 : i64, tpu.core_type = #tpu.core_type<tc>, window_params = [{transform_indices = @transform_0, window_bounds = array<i64: 2, 16, 192>}, {pipeline_mode = #tpu.pipeline_mode<synchronous>, transform_indices = @transform_1, window_bounds = array<i64: 192, 576>}, {pipeline_mode = #tpu.pipeline_mode<synchronous>, transform_indices = @transform_2, window_bounds = array<i64: 192, 192>}, {pipeline_mode = #tpu.pipeline_mode<synchronous>, transform_indices = @transform_3, window_bounds = array<i64: 1, 192>}, {transform_indices = @transform_4, window_bounds = array<i64: 2, 16, 192>}, {transform_indices = @transform_5, window_bounds = array<i64: 2, 3, 16, 16>}]} {
    %c0 = arith.constant 0 : index
    %c0_0 = arith.constant 0 : index
    %c0_1 = arith.constant 0 : index
    %0 = vector.load %arg1[%c0, %c0_0, %c0_1] : memref<2x16x192xf32, #tpu.memory_space<vmem>>, vector<2x16x192xf32>
    %1 = vector.shape_cast %0 : vector<2x16x192xf32> to vector<32x192xf32>
    %2 = arith.truncf %1 : vector<32x192xf32> to vector<32x192xbf16>
    %c0_2 = arith.constant 0 : index
    %c0_3 = arith.constant 0 : index
    %3 = vector.load %arg2[%c0_2, %c0_3] : memref<192x576xbf16, #tpu.memory_space<vmem>>, vector<192x576xbf16>
    %cst = arith.constant dense<0.000000e+00> : vector<32x576xf32>
    %4 = tpu.matmul %2, %3, %cst {dimension_numbers = #tpu.dot_dimension_numbers<[1], [0], [0], [1], [0, 0, 1, 1], [], []>} : vector<32x192xbf16>, vector<192x576xbf16>, vector<32x576xf32> -> vector<32x576xf32>
    %5 = vector.extract_strided_slice %4 {offsets = [0, 0], sizes = [16, 192], strides = [1, 1]} : vector<32x576xf32> to vector<16x192xf32>
    %6 = vector.extract_strided_slice %4 {offsets = [0, 192], sizes = [16, 192], strides = [1, 1]} : vector<32x576xf32> to vector<16x192xf32>
    %7 = vector.extract_strided_slice %4 {offsets = [0, 384], sizes = [16, 192], strides = [1, 1]} : vector<32x576xf32> to vector<16x192xf32>
    %8 = vector.extract_strided_slice %5 {offsets = [0, 0], sizes = [16, 64], strides = [1, 1]} : vector<16x192xf32> to vector<16x64xf32>
    %cst_4 = arith.constant 1.250000e-01 : f32
    %9 = vector.broadcast %cst_4 : f32 to vector<16x64xf32>
    %10 = arith.mulf %8, %9 : vector<16x64xf32>
    %11 = arith.truncf %10 : vector<16x64xf32> to vector<16x64xbf16>
    %12 = vector.extract_strided_slice %6 {offsets = [0, 0], sizes = [16, 64], strides = [1, 1]} : vector<16x192xf32> to vector<16x64xf32>
    %13 = arith.truncf %12 : vector<16x64xf32> to vector<16x64xbf16>
    %14 = vector.extract_strided_slice %7 {offsets = [0, 0], sizes = [16, 64], strides = [1, 1]} : vector<16x192xf32> to vector<16x64xf32>
    %15 = arith.truncf %14 : vector<16x64xf32> to vector<16x64xbf16>
    %cst_5 = arith.constant dense<0.000000e+00> : vector<16x16xf32>
    %16 = tpu.matmul %11, %13, %cst_5 {dimension_numbers = #tpu.dot_dimension_numbers<[1], [1], [0], [0], [0, 0, 1, 0], [], []>} : vector<16x64xbf16>, vector<16x64xbf16>, vector<16x16xf32> -> vector<16x16xf32>
    %cst_6 = arith.constant dense<0xFF800000> : vector<16xf32>
    %17 = vector.multi_reduction <maximumf>, %16, %cst_6 [1] : vector<16x16xf32> to vector<16xf32>
    %18 = vector.shape_cast %17 : vector<16xf32> to vector<16x1xf32>
    %19 = vector.broadcast %18 : vector<16x1xf32> to vector<16x16xf32>
    %20 = arith.subf %16, %19 : vector<16x16xf32>
    %21 = math.exp %20 : vector<16x16xf32>
    %cst_7 = arith.constant dense<0.000000e+00> : vector<16xf32>
    %22 = vector.multi_reduction <add>, %21, %cst_7 [1] : vector<16x16xf32> to vector<16xf32>
    %23 = vector.shape_cast %22 : vector<16xf32> to vector<16x1xf32>
    %24 = tpu.reciprocal %23 {approx = true} : vector<16x1xf32> -> vector<16x1xf32>
    %25 = vector.broadcast %24 : vector<16x1xf32> to vector<16x16xf32>
    %26 = arith.mulf %21, %25 : vector<16x16xf32>
    %c0_8 = arith.constant 0 : index
    %c0_9 = arith.constant 0 : index
    %c0_10 = arith.constant 0 : index
    %c0_11 = arith.constant 0 : index
    %27 = vector.load %arg6[%c0_8, %c0_9, %c0_10, %c0_11] : memref<2x3x16x16xf32, #tpu.memory_space<vmem>>, vector<1x1x16x16xf32>
    %28 = vector.shape_cast %27 : vector<1x1x16x16xf32> to vector<16x16xf32>
    %29 = vector.shape_cast %26 : vector<16x16xf32> to vector<1x1x16x16xf32>
    tpu.vector_store %arg6[%c0_8, %c0_9, %c0_10, %c0_11], %29 {strides = array<i32>} : memref<2x3x16x16xf32, #tpu.memory_space<vmem>>, vector<1x1x16x16xf32>,
    %30 = arith.truncf %26 : vector<16x16xf32> to vector<16x16xbf16>
    %cst_12 = arith.constant dense<0.000000e+00> : vector<16x64xf32>
    %31 = tpu.matmul %30, %15, %cst_12 {dimension_numbers = #tpu.dot_dimension_numbers<[1], [0], [0], [1], [0, 0, 1, 1], [], []>} : vector<16x16xbf16>, vector<16x64xbf16>, vector<16x64xf32> -> vector<16x64xf32>
    %32 = vector.extract_strided_slice %5 {offsets = [0, 64], sizes = [16, 64], strides = [1, 1]} : vector<16x192xf32> to vector<16x64xf32>
    %cst_13 = arith.constant 1.250000e-01 : f32
    %33 = vector.broadcast %cst_13 : f32 to vector<16x64xf32>
    %34 = arith.mulf %32, %33 : vector<16x64xf32>
    %35 = arith.truncf %34 : vector<16x64xf32> to vector<16x64xbf16>
    %36 = vector.extract_strided_slice %6 {offsets = [0, 64], sizes = [16, 64], strides = [1, 1]} : vector<16x192xf32> to vector<16x64xf32>
    %37 = arith.truncf %36 : vector<16x64xf32> to vector<16x64xbf16>
    %38 = vector.extract_strided_slice %7 {offsets = [0, 64], sizes = [16, 64], strides = [1, 1]} : vector<16x192xf32> to vector<16x64xf32>
    %39 = arith.truncf %38 : vector<16x64xf32> to vector<16x64xbf16>
    %cst_14 = arith.constant dense<0.000000e+00> : vector<16x16xf32>
    %40 = tpu.matmul %35, %37, %cst_14 {dimension_numbers = #tpu.dot_dimension_numbers<[1], [1], [0], [0], [0, 0, 1, 0], [], []>} : vector<16x64xbf16>, vector<16x64xbf16>, vector<16x16xf32> -> vector<16x16xf32>
    %cst_15 = arith.constant dense<0xFF800000> : vector<16xf32>
    %41 = vector.multi_reduction <maximumf>, %40, %cst_15 [1] : vector<16x16xf32> to vector<16xf32>
    %42 = vector.shape_cast %41 : vector<16xf32> to vector<16x1xf32>
    %43 = vector.broadcast %42 : vector<16x1xf32> to vector<16x16xf32>
    %44 = arith.subf %40, %43 : vector<16x16xf32>
    %45 = math.exp %44 : vector<16x16xf32>
    %cst_16 = arith.constant dense<0.000000e+00> : vector<16xf32>
    %46 = vector.multi_reduction <add>, %45, %cst_16 [1] : vector<16x16xf32> to vector<16xf32>
    %47 = vector.shape_cast %46 : vector<16xf32> to vector<16x1xf32>
    %48 = tpu.reciprocal %47 {approx = true} : vector<16x1xf32> -> vector<16x1xf32>
    %49 = vector.broadcast %48 : vector<16x1xf32> to vector<16x16xf32>
    %50 = arith.mulf %45, %49 : vector<16x16xf32>
    %c0_17 = arith.constant 0 : index
    %c1 = arith.constant 1 : index
    %c0_18 = arith.constant 0 : index
    %c0_19 = arith.constant 0 : index
    %51 = vector.load %arg6[%c0_17, %c1, %c0_18, %c0_19] : memref<2x3x16x16xf32, #tpu.memory_space<vmem>>, vector<1x1x16x16xf32>
    %52 = vector.shape_cast %51 : vector<1x1x16x16xf32> to vector<16x16xf32>
    %53 = vector.shape_cast %50 : vector<16x16xf32> to vector<1x1x16x16xf32>
    tpu.vector_store %arg6[%c0_17, %c1, %c0_18, %c0_19], %53 {strides = array<i32>} : memref<2x3x16x16xf32, #tpu.memory_space<vmem>>, vector<1x1x16x16xf32>,
    %54 = arith.truncf %50 : vector<16x16xf32> to vector<16x16xbf16>
    %cst_20 = arith.constant dense<0.000000e+00> : vector<16x64xf32>
    %55 = tpu.matmul %54, %39, %cst_20 {dimension_numbers = #tpu.dot_dimension_numbers<[1], [0], [0], [1], [0, 0, 1, 1], [], []>} : vector<16x16xbf16>, vector<16x64xbf16>, vector<16x64xf32> -> vector<16x64xf32>
    %56 = vector.extract_strided_slice %5 {offsets = [0, 128], sizes = [16, 64], strides = [1, 1]} : vector<16x192xf32> to vector<16x64xf32>
    %cst_21 = arith.constant 1.250000e-01 : f32
    %57 = vector.broadcast %cst_21 : f32 to vector<16x64xf32>
    %58 = arith.mulf %56, %57 : vector<16x64xf32>
    %59 = arith.truncf %58 : vector<16x64xf32> to vector<16x64xbf16>
    %60 = vector.extract_strided_slice %6 {offsets = [0, 128], sizes = [16, 64], strides = [1, 1]} : vector<16x192xf32> to vector<16x64xf32>
    %61 = arith.truncf %60 : vector<16x64xf32> to vector<16x64xbf16>
    %62 = vector.extract_strided_slice %7 {offsets = [0, 128], sizes = [16, 64], strides = [1, 1]} : vector<16x192xf32> to vector<16x64xf32>
    %63 = arith.truncf %62 : vector<16x64xf32> to vector<16x64xbf16>
    %cst_22 = arith.constant dense<0.000000e+00> : vector<16x16xf32>
    %64 = tpu.matmul %59, %61, %cst_22 {dimension_numbers = #tpu.dot_dimension_numbers<[1], [1], [0], [0], [0, 0, 1, 0], [], []>} : vector<16x64xbf16>, vector<16x64xbf16>, vector<16x16xf32> -> vector<16x16xf32>
    %cst_23 = arith.constant dense<0xFF800000> : vector<16xf32>
    %65 = vector.multi_reduction <maximumf>, %64, %cst_23 [1] : vector<16x16xf32> to vector<16xf32>
    %66 = vector.shape_cast %65 : vector<16xf32> to vector<16x1xf32>
    %67 = vector.broadcast %66 : vector<16x1xf32> to vector<16x16xf32>
    %68 = arith.subf %64, %67 : vector<16x16xf32>
    %69 = math.exp %68 : vector<16x16xf32>
    %cst_24 = arith.constant dense<0.000000e+00> : vector<16xf32>
    %70 = vector.multi_reduction <add>, %69, %cst_24 [1] : vector<16x16xf32> to vector<16xf32>
    %71 = vector.shape_cast %70 : vector<16xf32> to vector<16x1xf32>
    %72 = tpu.reciprocal %71 {approx = true} : vector<16x1xf32> -> vector<16x1xf32>
    %73 = vector.broadcast %72 : vector<16x1xf32> to vector<16x16xf32>
    %74 = arith.mulf %69, %73 : vector<16x16xf32>
    %c0_25 = arith.constant 0 : index
    %c2 = arith.constant 2 : index
    %c0_26 = arith.constant 0 : index
    %c0_27 = arith.constant 0 : index
    %75 = vector.load %arg6[%c0_25, %c2, %c0_26, %c0_27] : memref<2x3x16x16xf32, #tpu.memory_space<vmem>>, vector<1x1x16x16xf32>
    %76 = vector.shape_cast %75 : vector<1x1x16x16xf32> to vector<16x16xf32>
    %77 = vector.shape_cast %74 : vector<16x16xf32> to vector<1x1x16x16xf32>
    tpu.vector_store %arg6[%c0_25, %c2, %c0_26, %c0_27], %77 {strides = array<i32>} : memref<2x3x16x16xf32, #tpu.memory_space<vmem>>, vector<1x1x16x16xf32>,
    %78 = arith.truncf %74 : vector<16x16xf32> to vector<16x16xbf16>
    %cst_28 = arith.constant dense<0.000000e+00> : vector<16x64xf32>
    %79 = tpu.matmul %78, %63, %cst_28 {dimension_numbers = #tpu.dot_dimension_numbers<[1], [0], [0], [1], [0, 0, 1, 1], [], []>} : vector<16x16xbf16>, vector<16x64xbf16>, vector<16x64xf32> -> vector<16x64xf32>
    %80 = tpu.concatenate %31, %55, %79 in 1 : vector<16x64xf32>, vector<16x64xf32>, vector<16x64xf32> -> vector<16x192xf32>
    %81 = vector.extract_strided_slice %4 {offsets = [16, 0], sizes = [16, 192], strides = [1, 1]} : vector<32x576xf32> to vector<16x192xf32>
    %82 = vector.extract_strided_slice %4 {offsets = [16, 192], sizes = [16, 192], strides = [1, 1]} : vector<32x576xf32> to vector<16x192xf32>
    %83 = vector.extract_strided_slice %4 {offsets = [16, 384], sizes = [16, 192], strides = [1, 1]} : vector<32x576xf32> to vector<16x192xf32>
    %84 = vector.extract_strided_slice %81 {offsets = [0, 0], sizes = [16, 64], strides = [1, 1]} : vector<16x192xf32> to vector<16x64xf32>
    %cst_29 = arith.constant 1.250000e-01 : f32
    %85 = vector.broadcast %cst_29 : f32 to vector<16x64xf32>
    %86 = arith.mulf %84, %85 : vector<16x64xf32>
    %87 = arith.truncf %86 : vector<16x64xf32> to vector<16x64xbf16>
    %88 = vector.extract_strided_slice %82 {offsets = [0, 0], sizes = [16, 64], strides = [1, 1]} : vector<16x192xf32> to vector<16x64xf32>
    %89 = arith.truncf %88 : vector<16x64xf32> to vector<16x64xbf16>
    %90 = vector.extract_strided_slice %83 {offsets = [0, 0], sizes = [16, 64], strides = [1, 1]} : vector<16x192xf32> to vector<16x64xf32>
    %91 = arith.truncf %90 : vector<16x64xf32> to vector<16x64xbf16>
    %cst_30 = arith.constant dense<0.000000e+00> : vector<16x16xf32>
    %92 = tpu.matmul %87, %89, %cst_30 {dimension_numbers = #tpu.dot_dimension_numbers<[1], [1], [0], [0], [0, 0, 1, 0], [], []>} : vector<16x64xbf16>, vector<16x64xbf16>, vector<16x16xf32> -> vector<16x16xf32>
    %cst_31 = arith.constant dense<0xFF800000> : vector<16xf32>
    %93 = vector.multi_reduction <maximumf>, %92, %cst_31 [1] : vector<16x16xf32> to vector<16xf32>
    %94 = vector.shape_cast %93 : vector<16xf32> to vector<16x1xf32>
    %95 = vector.broadcast %94 : vector<16x1xf32> to vector<16x16xf32>
    %96 = arith.subf %92, %95 : vector<16x16xf32>
    %97 = math.exp %96 : vector<16x16xf32>
    %cst_32 = arith.constant dense<0.000000e+00> : vector<16xf32>
    %98 = vector.multi_reduction <add>, %97, %cst_32 [1] : vector<16x16xf32> to vector<16xf32>
    %99 = vector.shape_cast %98 : vector<16xf32> to vector<16x1xf32>
    %100 = tpu.reciprocal %99 {approx = true} : vector<16x1xf32> -> vector<16x1xf32>
    %101 = vector.broadcast %100 : vector<16x1xf32> to vector<16x16xf32>
    %102 = arith.mulf %97, %101 : vector<16x16xf32>
    %c1_33 = arith.constant 1 : index
    %c0_34 = arith.constant 0 : index
    %c0_35 = arith.constant 0 : index
    %c0_36 = arith.constant 0 : index
    %103 = vector.load %arg6[%c1_33, %c0_34, %c0_35, %c0_36] : memref<2x3x16x16xf32, #tpu.memory_space<vmem>>, vector<1x1x16x16xf32>
    %104 = vector.shape_cast %103 : vector<1x1x16x16xf32> to vector<16x16xf32>
    %105 = vector.shape_cast %102 : vector<16x16xf32> to vector<1x1x16x16xf32>
    tpu.vector_store %arg6[%c1_33, %c0_34, %c0_35, %c0_36], %105 {strides = array<i32>} : memref<2x3x16x16xf32, #tpu.memory_space<vmem>>, vector<1x1x16x16xf32>,
    %106 = arith.truncf %102 : vector<16x16xf32> to vector<16x16xbf16>
    %cst_37 = arith.constant dense<0.000000e+00> : vector<16x64xf32>
    %107 = tpu.matmul %106, %91, %cst_37 {dimension_numbers = #tpu.dot_dimension_numbers<[1], [0], [0], [1], [0, 0, 1, 1], [], []>} : vector<16x16xbf16>, vector<16x64xbf16>, vector<16x64xf32> -> vector<16x64xf32>
    %108 = vector.extract_strided_slice %81 {offsets = [0, 64], sizes = [16, 64], strides = [1, 1]} : vector<16x192xf32> to vector<16x64xf32>
    %cst_38 = arith.constant 1.250000e-01 : f32
    %109 = vector.broadcast %cst_38 : f32 to vector<16x64xf32>
    %110 = arith.mulf %108, %109 : vector<16x64xf32>
    %111 = arith.truncf %110 : vector<16x64xf32> to vector<16x64xbf16>
    %112 = vector.extract_strided_slice %82 {offsets = [0, 64], sizes = [16, 64], strides = [1, 1]} : vector<16x192xf32> to vector<16x64xf32>
    %113 = arith.truncf %112 : vector<16x64xf32> to vector<16x64xbf16>
    %114 = vector.extract_strided_slice %83 {offsets = [0, 64], sizes = [16, 64], strides = [1, 1]} : vector<16x192xf32> to vector<16x64xf32>
    %115 = arith.truncf %114 : vector<16x64xf32> to vector<16x64xbf16>
    %cst_39 = arith.constant dense<0.000000e+00> : vector<16x16xf32>
    %116 = tpu.matmul %111, %113, %cst_39 {dimension_numbers = #tpu.dot_dimension_numbers<[1], [1], [0], [0], [0, 0, 1, 0], [], []>} : vector<16x64xbf16>, vector<16x64xbf16>, vector<16x16xf32> -> vector<16x16xf32>
    %cst_40 = arith.constant dense<0xFF800000> : vector<16xf32>
    %117 = vector.multi_reduction <maximumf>, %116, %cst_40 [1] : vector<16x16xf32> to vector<16xf32>
    %118 = vector.shape_cast %117 : vector<16xf32> to vector<16x1xf32>
    %119 = vector.broadcast %118 : vector<16x1xf32> to vector<16x16xf32>
    %120 = arith.subf %116, %119 : vector<16x16xf32>
    %121 = math.exp %120 : vector<16x16xf32>
    %cst_41 = arith.constant dense<0.000000e+00> : vector<16xf32>
    %122 = vector.multi_reduction <add>, %121, %cst_41 [1] : vector<16x16xf32> to vector<16xf32>
    %123 = vector.shape_cast %122 : vector<16xf32> to vector<16x1xf32>
    %124 = tpu.reciprocal %123 {approx = true} : vector<16x1xf32> -> vector<16x1xf32>
    %125 = vector.broadcast %124 : vector<16x1xf32> to vector<16x16xf32>
    %126 = arith.mulf %121, %125 : vector<16x16xf32>
    %c1_42 = arith.constant 1 : index
    %c1_43 = arith.constant 1 : index
    %c0_44 = arith.constant 0 : index
    %c0_45 = arith.constant 0 : index
    %127 = vector.load %arg6[%c1_42, %c1_43, %c0_44, %c0_45] : memref<2x3x16x16xf32, #tpu.memory_space<vmem>>, vector<1x1x16x16xf32>
    %128 = vector.shape_cast %127 : vector<1x1x16x16xf32> to vector<16x16xf32>
    %129 = vector.shape_cast %126 : vector<16x16xf32> to vector<1x1x16x16xf32>
    tpu.vector_store %arg6[%c1_42, %c1_43, %c0_44, %c0_45], %129 {strides = array<i32>} : memref<2x3x16x16xf32, #tpu.memory_space<vmem>>, vector<1x1x16x16xf32>,
    %130 = arith.truncf %126 : vector<16x16xf32> to vector<16x16xbf16>
    %cst_46 = arith.constant dense<0.000000e+00> : vector<16x64xf32>
    %131 = tpu.matmul %130, %115, %cst_46 {dimension_numbers = #tpu.dot_dimension_numbers<[1], [0], [0], [1], [0, 0, 1, 1], [], []>} : vector<16x16xbf16>, vector<16x64xbf16>, vector<16x64xf32> -> vector<16x64xf32>
    %132 = vector.extract_strided_slice %81 {offsets = [0, 128], sizes = [16, 64], strides = [1, 1]} : vector<16x192xf32> to vector<16x64xf32>
    %cst_47 = arith.constant 1.250000e-01 : f32
    %133 = vector.broadcast %cst_47 : f32 to vector<16x64xf32>
    %134 = arith.mulf %132, %133 : vector<16x64xf32>
    %135 = arith.truncf %134 : vector<16x64xf32> to vector<16x64xbf16>
    %136 = vector.extract_strided_slice %82 {offsets = [0, 128], sizes = [16, 64], strides = [1, 1]} : vector<16x192xf32> to vector<16x64xf32>
    %137 = arith.truncf %136 : vector<16x64xf32> to vector<16x64xbf16>
    %138 = vector.extract_strided_slice %83 {offsets = [0, 128], sizes = [16, 64], strides = [1, 1]} : vector<16x192xf32> to vector<16x64xf32>
    %139 = arith.truncf %138 : vector<16x64xf32> to vector<16x64xbf16>
    %cst_48 = arith.constant dense<0.000000e+00> : vector<16x16xf32>
    %140 = tpu.matmul %135, %137, %cst_48 {dimension_numbers = #tpu.dot_dimension_numbers<[1], [1], [0], [0], [0, 0, 1, 0], [], []>} : vector<16x64xbf16>, vector<16x64xbf16>, vector<16x16xf32> -> vector<16x16xf32>
    %cst_49 = arith.constant dense<0xFF800000> : vector<16xf32>
    %141 = vector.multi_reduction <maximumf>, %140, %cst_49 [1] : vector<16x16xf32> to vector<16xf32>
    %142 = vector.shape_cast %141 : vector<16xf32> to vector<16x1xf32>
    %143 = vector.broadcast %142 : vector<16x1xf32> to vector<16x16xf32>
    %144 = arith.subf %140, %143 : vector<16x16xf32>
    %145 = math.exp %144 : vector<16x16xf32>
    %cst_50 = arith.constant dense<0.000000e+00> : vector<16xf32>
    %146 = vector.multi_reduction <add>, %145, %cst_50 [1] : vector<16x16xf32> to vector<16xf32>
    %147 = vector.shape_cast %146 : vector<16xf32> to vector<16x1xf32>
    %148 = tpu.reciprocal %147 {approx = true} : vector<16x1xf32> -> vector<16x1xf32>
    %149 = vector.broadcast %148 : vector<16x1xf32> to vector<16x16xf32>
    %150 = arith.mulf %145, %149 : vector<16x16xf32>
    %c1_51 = arith.constant 1 : index
    %c2_52 = arith.constant 2 : index
    %c0_53 = arith.constant 0 : index
    %c0_54 = arith.constant 0 : index
    %151 = vector.load %arg6[%c1_51, %c2_52, %c0_53, %c0_54] : memref<2x3x16x16xf32, #tpu.memory_space<vmem>>, vector<1x1x16x16xf32>
    %152 = vector.shape_cast %151 : vector<1x1x16x16xf32> to vector<16x16xf32>
    %153 = vector.shape_cast %150 : vector<16x16xf32> to vector<1x1x16x16xf32>
    tpu.vector_store %arg6[%c1_51, %c2_52, %c0_53, %c0_54], %153 {strides = array<i32>} : memref<2x3x16x16xf32, #tpu.memory_space<vmem>>, vector<1x1x16x16xf32>,
    %154 = arith.truncf %150 : vector<16x16xf32> to vector<16x16xbf16>
    %cst_55 = arith.constant dense<0.000000e+00> : vector<16x64xf32>
    %155 = tpu.matmul %154, %139, %cst_55 {dimension_numbers = #tpu.dot_dimension_numbers<[1], [0], [0], [1], [0, 0, 1, 1], [], []>} : vector<16x16xbf16>, vector<16x64xbf16>, vector<16x64xf32> -> vector<16x64xf32>
    %156 = tpu.concatenate %107, %131, %155 in 1 : vector<16x64xf32>, vector<16x64xf32>, vector<16x64xf32> -> vector<16x192xf32>
    %157 = tpu.concatenate %80, %156 in 0 : vector<16x192xf32>, vector<16x192xf32> -> vector<32x192xf32>
    %158 = arith.truncf %157 : vector<32x192xf32> to vector<32x192xbf16>
    %c0_56 = arith.constant 0 : index
    %c0_57 = arith.constant 0 : index
    %159 = vector.load %arg3[%c0_56, %c0_57] : memref<192x192xbf16, #tpu.memory_space<vmem>>, vector<192x192xbf16>
    %cst_58 = arith.constant dense<0.000000e+00> : vector<32x192xf32>
    %160 = tpu.matmul %158, %159, %cst_58 {dimension_numbers = #tpu.dot_dimension_numbers<[1], [0], [0], [1], [0, 0, 1, 1], [], []>} : vector<32x192xbf16>, vector<192x192xbf16>, vector<32x192xf32> -> vector<32x192xf32>
    %c0_59 = arith.constant 0 : index
    %c0_60 = arith.constant 0 : index
    %161 = vector.load %arg4[%c0_59, %c0_60] : memref<1x192xf32, #tpu.memory_space<vmem>>, vector<1x192xf32>
    %162 = vector.broadcast %161 : vector<1x192xf32> to vector<32x192xf32>
    %163 = arith.addf %160, %162 : vector<32x192xf32>
    %164 = vector.shape_cast %163 : vector<32x192xf32> to vector<2x16x192xf32>
    %c0_61 = arith.constant 0 : index
    %c0_62 = arith.constant 0 : index
    %c0_63 = arith.constant 0 : index
    %165 = vector.load %arg5[%c0_61, %c0_62, %c0_63] : memref<2x16x192xf32, #tpu.memory_space<vmem>>, vector<2x16x192xf32>
    tpu.vector_store %arg5[%c0_61, %c0_62, %c0_63], %164 {strides = array<i32>} : memref<2x16x192xf32, #tpu.memory_space<vmem>>, vector<2x16x192xf32>,
    return
  }
  func.func @transform_0(%arg0: i32) -> (i32, i32, i32) {
    %c0_i32 = arith.constant 0 : i32
    %c0_i32_0 = arith.constant 0 : i32
    %c0_i32_1 = arith.constant 0 : i32
    return %arg0, %c0_i32, %c0_i32_0 : i32, i32, i32
  }
  func.func @transform_1(%arg0: i32) -> (i32, i32) {
    %c0_i32 = arith.constant 0 : i32
    %c0_i32_0 = arith.constant 0 : i32
    %c0_i32_1 = arith.constant 0 : i32
    return %c0_i32, %c0_i32_0 : i32, i32
  }
  func.func @transform_2(%arg0: i32) -> (i32, i32) {
    %c0_i32 = arith.constant 0 : i32
    %c0_i32_0 = arith.constant 0 : i32
    %c0_i32_1 = arith.constant 0 : i32
    return %c0_i32, %c0_i32_0 : i32, i32
  }
  func.func @transform_3(%arg0: i32) -> (i32, i32) {
    %c0_i32 = arith.constant 0 : i32
    %c0_i32_0 = arith.constant 0 : i32
    %c0_i32_1 = arith.constant 0 : i32
    return %c0_i32, %c0_i32_0 : i32, i32
  }
  func.func @transform_4(%arg0: i32) -> (i32, i32, i32) {
    %c0_i32 = arith.constant 0 : i32
    %c0_i32_0 = arith.constant 0 : i32
    %c0_i32_1 = arith.constant 0 : i32
    return %arg0, %c0_i32, %c0_i32_0 : i32, i32, i32
  }
  func.func @transform_5(%arg0: i32) -> (i32, i32, i32, i32) {
    %c0_i32 = arith.constant 0 : i32
    %c0_i32_0 = arith.constant 0 : i32
    %c0_i32_1 = arith.constant 0 : i32
    %c0_i32_2 = arith.constant 0 : i32
    return %arg0, %c0_i32, %c0_i32_0, %c0_i32_1 : i32, i32, i32, i32
  }
}

</mosaic_0001>

<llo_original>
// kernel: tpu_custom_call.1
$region0: #{tpu_custom_call.1}
  #allocation0 [shape = 'u32[]', space=smem, size = 0x4, offset = 0x4, fixed_abs, tag = 'smem constant byte address 0x4 - core index']
  #allocation1 [shape = 'u32[72,128]{1,0:T(1,128)}', space=vmem, size = 0x9000, scoped, tag = 'internal scratch']
  %s0 = inlined_call_operand.hbm [shape: f32[2,16,192], index: 0, kind: input, shape index: {}]
  %s1 = inlined_call_operand.hbm [shape: bf16[192,576], index: 1, kind: input, shape index: {}]
  %s2 = inlined_call_operand.hbm [shape: bf16[192,192], index: 2, kind: input, shape index: {}]
  %s3 = inlined_call_operand.vmem [shape: f32[1,192], index: 3, kind: input, shape index: {}]
  %s4 = inlined_call_operand.hbm [shape: f32[2,16,192], index: 4, kind: output, shape index: {0}]
  %s5 = inlined_call_operand.hbm [shape: f32[2,3,16,16], index: 5, kind: output, shape index: {1}]
  %6 = xla_tuple %s4, %s5
  %s7 = sld [smem:[#allocation0]]
  $region46: #{tpu_custom_call.1} parent=0
    _
  %s9 = ssub.s32 1, %s7
  %s10 = scalar_select 0, %s9, %s7
  $region1: #{tpu_custom_call.1} parent=0
    #allocation2 [shape = 'u8[32768]{0}', space=vmem, size = 0x8000, scoped, tag = 'input window, operand 0, single buffered']
    #allocation3 [shape = 's32[1]{0}', space=sflag, size = 0x4, scoped, tag = 'scoped memory for tpu_custom_call.1']
    #allocation4 [shape = 's32[1]{0}', space=sflag, size = 0x4, scoped, tag = 'scoped memory for tpu_custom_call.1']
    #allocation5 [shape = 'u8[245760]{0}', space=vmem, size = 0x3c000, scoped, tag = 'input window, operand 1, single buffered']
    #allocation6 [shape = 's32[1]{0}', space=sflag, size = 0x4, scoped, tag = 'scoped memory for tpu_custom_call.1']
    #allocation7 [shape = 'u8[98304]{0}', space=vmem, size = 0x18000, scoped, tag = 'input window, operand 2, single buffered']
    #allocation8 [shape = 'u8[32768]{0}', space=vmem, size = 0x8000, scoped, tag = 'output window, operand 0, single buffered']
    #allocation9 [shape = 'u8[49152]{0}', space=vmem, size = 0xc000, scoped, tag = 'output window, operand 1, single buffered']
    #allocation10 [shape = 's32[1]{0}', space=sflag, size = 0x4, scoped, tag = 'scoped memory for tpu_custom_call.1']
    %11 = vsyncpa [#allocation3], 0
    %12 = vsyncpa [#allocation6], 0
    %13 = vsyncpa [#allocation4], 0
    %14 = vsyncpa [#allocation10], 0
    // Predicated region
    $region2: #{tpu_custom_call.1} parent=1 // pred_check
      _
    $region3: #{tpu_custom_call.1} parent=1 // pred_check_branch
      %16 = sbr.rel (0) target = $region5
    $region4: #{tpu_custom_call.1} parent=1 // pred_region
      %18 = vsyncadd [#allocation3], 0
      %s19 = sshll.u32 %s0, 4
      %s20 = int_to_ptr.hbm [resolvable:$true] %s19
      %s21 = sshll.u32 [#allocation2], 4
      %s22 = int_to_ptr.vmem [resolvable:$true] %s21
      %27 = dma.hbm_to_vmem [thread:$0]  %s20, 1024, %s22, [#allocation3], 256, 256, 16
    $region5: #{tpu_custom_call.1} parent=1 // pred_fallthru
      _
    // Predicated region
    $region6: #{tpu_custom_call.1} parent=1 // pred_check
      _
    $region7: #{tpu_custom_call.1} parent=1 // pred_check_branch
      %29 = sbr.rel (0) target = $region9
    $region8: #{tpu_custom_call.1} parent=1 // pred_region
      %31 = vsyncadd [#allocation6], 0
      %s32 = sshll.u32 %s1, 4
      %s33 = int_to_ptr.hbm [resolvable:$true] %s32
      %s34 = sshll.u32 [#allocation5], 4
      %s35 = int_to_ptr.vmem [resolvable:$true] %s34
      %40 = dma.hbm_to_vmem [thread:$0]  %s33, 7680, %s35, [#allocation6], 320, 320, 20
    $region9: #{tpu_custom_call.1} parent=1 // pred_fallthru
      _
    // Predicated region
    $region10: #{tpu_custom_call.1} parent=1 // pred_check
      _
    $region11: #{tpu_custom_call.1} parent=1 // pred_check_branch
      %42 = sbr.rel (0) target = $region13
    $region12: #{tpu_custom_call.1} parent=1 // pred_region
      %44 = vsyncadd [#allocation6], 0
      %s45 = sshll.u32 %s2, 4
      %s46 = int_to_ptr.hbm [resolvable:$true] %s45
      %s47 = sshll.u32 [#allocation7], 4
      %s48 = int_to_ptr.vmem [resolvable:$true] %s47
      %53 = dma.hbm_to_vmem [thread:$0]  %s46, 3072, %s48, [#allocation6], 128, 128, 8
    $region13: #{tpu_custom_call.1} parent=1 // pred_fallthru
      _
    // Predicated region
    $region14: #{tpu_custom_call.1} parent=1 // pred_check
      _
    $region15: #{tpu_custom_call.1} parent=1 // pred_check_branch
      %55 = sbr.rel (0) target = $region17
    $region16: #{tpu_custom_call.1} parent=1 // pred_region
      _
    $region17: #{tpu_custom_call.1} parent=1 // pred_fallthru
      _
    // Predicated region
    $region18: #{tpu_custom_call.1} parent=1 // pred_check
      _
    $region19: #{tpu_custom_call.1} parent=1 // pred_check_branch
      %57 = sbr.rel (0) target = $region21
    $region20: #{tpu_custom_call.1} parent=1 // pred_region
      %59 = dma.done [#allocation3], 1024
    $region21: #{tpu_custom_call.1} parent=1 // pred_fallthru
      _
    // Predicated region
    $region22: #{tpu_custom_call.1} parent=1 // pred_check
      _
    $region23: #{tpu_custom_call.1} parent=1 // pred_check_branch
      %61 = sbr.rel (0) target = $region25
    $region24: #{tpu_custom_call.1} parent=1 // pred_region
      %63 = dma.done [#allocation6], 7680
    $region25: #{tpu_custom_call.1} parent=1 // pred_fallthru
      _
    // Predicated region
    $region26: #{tpu_custom_call.1} parent=1 // pred_check
      _
    $region27: #{tpu_custom_call.1} parent=1 // pred_check_branch
      %65 = sbr.rel (0) target = $region29
    $region28: #{tpu_custom_call.1} parent=1 // pred_region
      %67 = dma.done [#allocation6], 3072
    $region29: #{tpu_custom_call.1} parent=1 // pred_fallthru
      _
    %v69 = vld [vmem:[#allocation2] sm:$0xff]
    %v70 = vld [vmem:[#allocation2 + $0x8] sm:$0xff]
    %v71 = vld [vmem:[#allocation2 + $0x10] sm:$0xff]
    %v72 = vld [vmem:[#allocation2 + $0x18] sm:$0xff]
    %v73 = vld [vmem:[#allocation2 + $0x20] sm:$0xff]
    %v74 = vld [vmem:[#allocation2 + $0x28] sm:$0xff]
    %v75 = vld [vmem:[#allocation2 + $0x30] sm:$0xff]
    %v76 = vld [vmem:[#allocation2 + $0x38] sm:$0xff]
    %v77 = vpack.c.bf16 %v71, %v69
    %v78 = vpack.c.bf16 %v72, %v70
    %v79 = vpack.c.bf16 %v75, %v73
    %v80 = vpack.c.bf16 %v76, %v74
    %v81 = vld [vmem:[#allocation5] sm:$0xff]
    %v82 = vld [vmem:[#allocation5 + $0x8] sm:$0xff]
    %v83 = vld [vmem:[#allocation5 + $0x10] sm:$0xf]
    %v84 = vld [vmem:[#allocation5 + $0x14] sm:$0xff]
    %v85 = vld [vmem:[#allocation5 + $0x1c] sm:$0xff]
    %v86 = vld [vmem:[#allocation5 + $0x24] sm:$0xf]
    %v87 = vld [vmem:[#allocation5 + $0x28] sm:$0xff]
    %v88 = vld [vmem:[#allocation5 + $0x30] sm:$0xff]
    %v89 = vld [vmem:[#allocation5 + $0x38] sm:$0xf]
    %v90 = vld [vmem:[#allocation5 + $0x3c] sm:$0xff]
    %v91 = vld [vmem:[#allocation5 + $0x44] sm:$0xff]
    %v92 = vld [vmem:[#allocation5 + $0x4c] sm:$0xf]
    %v93 = vld [vmem:[#allocation5 + $0x50] sm:$0xff]
    %v94 = vld [vmem:[#allocation5 + $0x58] sm:$0xff]
    %v95 = vld [vmem:[#allocation5 + $0x60] sm:$0xf]
    %v96 = vld [vmem:[#allocation5 + $0x64] sm:$0xff]
    %v97 = vld [vmem:[#allocation5 + $0x6c] sm:$0xff]
    %v98 = vld [vmem:[#allocation5 + $0x74] sm:$0xf]
    %v99 = vld [vmem:[#allocation5 + $0x78] sm:$0xff]
    %v100 = vld [vmem:[#allocation5 + $0x80] sm:$0xff]
    %v101 = vld [vmem:[#allocation5 + $0x88] sm:$0xf]
    %v102 = vld [vmem:[#allocation5 + $0x8c] sm:$0xff]
    %v103 = vld [vmem:[#allocation5 + $0x94] sm:$0xff]
    %v104 = vld [vmem:[#allocation5 + $0x9c] sm:$0xf]
    %v105 = vld [vmem:[#allocation5 + $0xa0] sm:$0xff]
    %v106 = vld [vmem:[#allocation5 + $0xa8] sm:$0xff]
    %v107 = vld [vmem:[#allocation5 + $0xb0] sm:$0xf]
    %v108 = vld [vmem:[#allocation5 + $0xb4] sm:$0xff]
    %v109 = vld [vmem:[#allocation5 + $0xbc] sm:$0xff]
    %v110 = vld [vmem:[#allocation5 + $0xc4] sm:$0xf]
    %v111 = vld [vmem:[#allocation5 + $0xc8] sm:$0xff]
    %v112 = vld [vmem:[#allocation5 + $0xd0] sm:$0xff]
    %v113 = vld [vmem:[#allocation5 + $0xd8] sm:$0xf]
    %v114 = vld [vmem:[#allocation5 + $0xdc] sm:$0xff]
    %v115 = vld [vmem:[#allocation5 + $0xe4] sm:$0xff]
    %v116 = vld [vmem:[#allocation5 + $0xec] sm:$0xf]
    %v117 = vld [vmem:[#allocation5 + $0xf0] sm:$0xff]
    %v118 = vld [vmem:[#allocation5 + $0xf8] sm:$0xff]
    %v119 = vld [vmem:[#allocation5 + $0x100] sm:$0xf]
    %v120 = vld [vmem:[#allocation5 + $0x104] sm:$0xff]
    %v121 = vld [vmem:[#allocation5 + $0x10c] sm:$0xff]
    %v122 = vld [vmem:[#allocation5 + $0x114] sm:$0xf]
    %v123 = vld [vmem:[#allocation5 + $0x118] sm:$0xff]
    %v124 = vld [vmem:[#allocation5 + $0x120] sm:$0xff]
    %v125 = vld [vmem:[#allocation5 + $0x128] sm:$0xf]
    %v126 = vld [vmem:[#allocation5 + $0x12c] sm:$0xff]
    %v127 = vld [vmem:[#allocation5 + $0x134] sm:$0xff]
    %v128 = vld [vmem:[#allocation5 + $0x13c] sm:$0xf]
    %v129 = vld [vmem:[#allocation5 + $0x140] sm:$0xff]
    %v130 = vld [vmem:[#allocation5 + $0x148] sm:$0xff]
    %v131 = vld [vmem:[#allocation5 + $0x150] sm:$0xf]
    %v132 = vld [vmem:[#allocation5 + $0x154] sm:$0xff]
    %v133 = vld [vmem:[#allocation5 + $0x15c] sm:$0xff]
    %v134 = vld [vmem:[#allocation5 + $0x164] sm:$0xf]
    %v135 = vld [vmem:[#allocation5 + $0x168] sm:$0xff]
    %v136 = vld [vmem:[#allocation5 + $0x170] sm:$0xff]
    %v137 = vld [vmem:[#allocation5 + $0x178] sm:$0xf]
    %v138 = vld [vmem:[#allocation5 + $0x17c] sm:$0xff]
    %v139 = vld [vmem:[#allocation5 + $0x184] sm:$0xff]
    %v140 = vld [vmem:[#allocation5 + $0x18c] sm:$0xf]
    %v141 = vld [vmem:[#allocation5 + $0x190] sm:$0xff]
    %v142 = vld [vmem:[#allocation5 + $0x198] sm:$0xff]
    %v143 = vld [vmem:[#allocation5 + $0x1a0] sm:$0xf]
    %v144 = vld [vmem:[#allocation5 + $0x1a4] sm:$0xff]
    %v145 = vld [vmem:[#allocation5 + $0x1ac] sm:$0xff]
    %v146 = vld [vmem:[#allocation5 + $0x1b4] sm:$0xf]
    %v147 = vld [vmem:[#allocation5 + $0x1b8] sm:$0xff]
    %v148 = vld [vmem:[#allocation5 + $0x1c0] sm:$0xff]
    %v149 = vld [vmem:[#allocation5 + $0x1c8] sm:$0xf]
    %v150 = vld [vmem:[#allocation5 + $0x1cc] sm:$0xff]
    %v151 = vld [vmem:[#allocation5 + $0x1d4] sm:$0xff]
    %v152 = vld [vmem:[#allocation5 + $0x1dc] sm:$0xf]
    %v225 = vunpack.c.l.b16 %v81
    %v226 = vunpack.c.h.b16 %v81
    %v227 = vunpack.c.l.b16 %v82
    %v228 = vunpack.c.h.b16 %v82
    %v229 = vunpack.c.l.b16 %v83
    %v230 = vunpack.c.l.b16 %v84
    %v231 = vunpack.c.h.b16 %v84
    %v232 = vunpack.c.l.b16 %v85
    %v233 = vunpack.c.h.b16 %v85
    %v234 = vunpack.c.l.b16 %v86
    %v235 = vunpack.c.l.b16 %v87
    %v236 = vunpack.c.h.b16 %v87
    %v237 = vunpack.c.l.b16 %v88
    %v238 = vunpack.c.h.b16 %v88
    %v239 = vunpack.c.l.b16 %v89
    %v240 = vunpack.c.l.b16 %v90
    %v241 = vunpack.c.h.b16 %v90
    %v242 = vunpack.c.l.b16 %v91
    %v243 = vunpack.c.h.b16 %v91
    %v244 = vunpack.c.l.b16 %v92
    %v245 = vunpack.c.l.b16 %v93
    %v246 = vunpack.c.h.b16 %v93
    %v247 = vunpack.c.l.b16 %v94
    %v248 = vunpack.c.h.b16 %v94
    %v249 = vunpack.c.l.b16 %v95
    %v250 = vunpack.c.l.b16 %v96
    %v251 = vunpack.c.h.b16 %v96
    %v252 = vunpack.c.l.b16 %v97
    %v253 = vunpack.c.h.b16 %v97
    %v254 = vunpack.c.l.b16 %v98
    %v255 = vunpack.c.l.b16 %v99
    %v256 = vunpack.c.h.b16 %v99
    %v257 = vunpack.c.l.b16 %v100
    %v258 = vunpack.c.h.b16 %v100
    %v259 = vunpack.c.l.b16 %v101
    %v260 = vunpack.c.l.b16 %v102
    %v261 = vunpack.c.h.b16 %v102
    %v262 = vunpack.c.l.b16 %v103
    %v263 = vunpack.c.h.b16 %v103
    %v264 = vunpack.c.l.b16 %v104
    %v265 = vunpack.c.l.b16 %v105
    %v266 = vunpack.c.h.b16 %v105
    %v267 = vunpack.c.l.b16 %v106
    %v268 = vunpack.c.h.b16 %v106
    %v269 = vunpack.c.l.b16 %v107
    %v270 = vunpack.c.l.b16 %v108
    %v271 = vunpack.c.h.b16 %v108
    %v272 = vunpack.c.l.b16 %v109
    %v273 = vunpack.c.h.b16 %v109
    %v274 = vunpack.c.l.b16 %v110
    %v275 = vunpack.c.l.b16 %v111
    %v276 = vunpack.c.h.b16 %v111
    %v277 = vunpack.c.l.b16 %v112
    %v278 = vunpack.c.h.b16 %v112
    %v279 = vunpack.c.l.b16 %v113
    %v280 = vunpack.c.l.b16 %v114
    %v281 = vunpack.c.h.b16 %v114
    %v282 = vunpack.c.l.b16 %v115
    %v283 = vunpack.c.h.b16 %v115
    %v284 = vunpack.c.l.b16 %v116
    %v285 = vunpack.c.l.b16 %v117
    %v286 = vunpack.c.h.b16 %v117
    %v287 = vunpack.c.l.b16 %v118
    %v288 = vunpack.c.h.b16 %v118
    %v289 = vunpack.c.l.b16 %v119
    %v290 = vunpack.c.l.b16 %v120
    %v291 = vunpack.c.h.b16 %v120
    %v292 = vunpack.c.l.b16 %v121
    %v293 = vunpack.c.h.b16 %v121
    %v294 = vunpack.c.l.b16 %v122
    %v295 = vunpack.c.l.b16 %v123
    %v296 = vunpack.c.h.b16 %v123
    %v297 = vunpack.c.l.b16 %v124
    %v298 = vunpack.c.h.b16 %v124
    %v299 = vunpack.c.l.b16 %v125
    %v300 = vunpack.c.l.b16 %v126
    %v301 = vunpack.c.h.b16 %v126
    %v302 = vunpack.c.l.b16 %v127
    %v303 = vunpack.c.h.b16 %v127
    %v304 = vunpack.c.l.b16 %v128
    %v305 = vunpack.c.l.b16 %v129
    %v306 = vunpack.c.h.b16 %v129
    %v307 = vunpack.c.l.b16 %v130
    %v308 = vunpack.c.h.b16 %v130
    %v309 = vunpack.c.l.b16 %v131
    %v310 = vunpack.c.l.b16 %v132
    %v311 = vunpack.c.h.b16 %v132
    %v312 = vunpack.c.l.b16 %v133
    %v313 = vunpack.c.h.b16 %v133
    %v314 = vunpack.c.l.b16 %v134
    %v315 = vunpack.c.l.b16 %v135
    %v316 = vunpack.c.h.b16 %v135
    %v317 = vunpack.c.l.b16 %v136
    %v318 = vunpack.c.h.b16 %v136
    %v319 = vunpack.c.l.b16 %v137
    %v320 = vunpack.c.l.b16 %v138
    %v321 = vunpack.c.h.b16 %v138
    %v322 = vunpack.c.l.b16 %v139
    %v323 = vunpack.c.h.b16 %v139
    %v324 = vunpack.c.l.b16 %v140
    %v325 = vunpack.c.l.b16 %v141
    %v326 = vunpack.c.h.b16 %v141
    %v327 = vunpack.c.l.b16 %v142
    %v328 = vunpack.c.h.b16 %v142
    %v329 = vunpack.c.l.b16 %v143
    %v330 = vunpack.c.l.b16 %v144
    %v331 = vunpack.c.h.b16 %v144
    %v332 = vunpack.c.l.b16 %v145
    %v333 = vunpack.c.h.b16 %v145
    %v334 = vunpack.c.l.b16 %v146
    %v335 = vunpack.c.l.b16 %v147
    %v336 = vunpack.c.h.b16 %v147
    %v337 = vunpack.c.l.b16 %v148
    %v338 = vunpack.c.h.b16 %v148
    %v339 = vunpack.c.l.b16 %v149
    %v340 = vunpack.c.l.b16 %v150
    %v341 = vunpack.c.h.b16 %v150
    %v342 = vunpack.c.l.b16 %v151
    %v343 = vunpack.c.h.b16 %v151
    %v344 = vunpack.c.l.b16 %v152
    %v345 = vpack.c.b16 %v230, %v225
    %v346 = vpack.c.b16 %v231, %v226
    %v347 = vpack.c.b16 %v232, %v227
    %v348 = vpack.c.b16 %v233, %v228
    %v349 = vpack.c.b16 %v234, %v229
    %v350 = vpack.c.b16 %v240, %v235
    %v351 = vpack.c.b16 %v241, %v236
    %v352 = vpack.c.b16 %v242, %v237
    %v353 = vpack.c.b16 %v243, %v238
    %v354 = vpack.c.b16 %v244, %v239
    %v355 = vpack.c.b16 %v250, %v245
    %v356 = vpack.c.b16 %v251, %v246
    %v357 = vpack.c.b16 %v252, %v247
    %v358 = vpack.c.b16 %v253, %v248
    %v359 = vpack.c.b16 %v254, %v249
    %v360 = vpack.c.b16 %v260, %v255
    %v361 = vpack.c.b16 %v261, %v256
    %v362 = vpack.c.b16 %v262, %v257
    %v363 = vpack.c.b16 %v263, %v258
    %v364 = vpack.c.b16 %v264, %v259
    %v365 = vpack.c.b16 %v270, %v265
    %v366 = vpack.c.b16 %v271, %v266
    %v367 = vpack.c.b16 %v272, %v267
    %v368 = vpack.c.b16 %v273, %v268
    %v369 = vpack.c.b16 %v274, %v269
    %v370 = vpack.c.b16 %v280, %v275
    %v371 = vpack.c.b16 %v281, %v276
    %v372 = vpack.c.b16 %v282, %v277
    %v373 = vpack.c.b16 %v283, %v278
    %v374 = vpack.c.b16 %v284, %v279
    %v375 = vpack.c.b16 %v290, %v285
    %v376 = vpack.c.b16 %v291, %v286
    %v377 = vpack.c.b16 %v292, %v287
    %v378 = vpack.c.b16 %v293, %v288
    %v379 = vpack.c.b16 %v294, %v289
    %v380 = vpack.c.b16 %v300, %v295
    %v381 = vpack.c.b16 %v301, %v296
    %v382 = vpack.c.b16 %v302, %v297
    %v383 = vpack.c.b16 %v303, %v298
    %v384 = vpack.c.b16 %v304, %v299
    %v385 = vpack.c.b16 %v310, %v305
    %v386 = vpack.c.b16 %v311, %v306
    %v387 = vpack.c.b16 %v312, %v307
    %v388 = vpack.c.b16 %v313, %v308
    %v389 = vpack.c.b16 %v314, %v309
    %v390 = vpack.c.b16 %v320, %v315
    %v391 = vpack.c.b16 %v321, %v316
    %v392 = vpack.c.b16 %v322, %v317
    %v393 = vpack.c.b16 %v323, %v318
    %v394 = vpack.c.b16 %v324, %v319
    %v395 = vpack.c.b16 %v330, %v325
    %v396 = vpack.c.b16 %v331, %v326
    %v397 = vpack.c.b16 %v332, %v327
    %v398 = vpack.c.b16 %v333, %v328
    %v399 = vpack.c.b16 %v334, %v329
    %v400 = vpack.c.b16 %v340, %v335
    %v401 = vpack.c.b16 %v341, %v336
    %v402 = vpack.c.b16 %v342, %v337
    %v403 = vpack.c.b16 %v343, %v338
    %v404 = vpack.c.b16 %v344, %v339
    %vm465 = vcmask 523264
    %v467 = vsel %vm465, %v78, 0
    %v470 = vsel %vm465, %v80, 0
    %472 = vmatpush.bf16.msra.mxu0 %v380
    %473 = vmatpush.bf16.msra.mxu0 %v375
    %474 = vmatpush.bf16.msra.mxu0 %v370
    %475 = vmatpush.bf16.msra.mxu0 %v365
    %476 = vmatpush.bf16.msra.mxu0 %v360
    %477 = vmatpush.bf16.msra.mxu0 %v355
    %478 = vmatpush.bf16.msra.mxu0 %v350
    %479 = vmatpush.bf16.msra.mxu0 %v345
    %480 = vmatmul.bf16.gmra.mxu0 %v77
    %v481 = vpop.f32.mrf.mxu0
    %v482 = vadd.f32 0.0, %v481
    %v483 = vpop.f32.mrf.mxu0
    %v484 = vadd.f32 0.0, %v483
    %485 = vmatmul.bf16.gmra.mxu0 %v79
    %v486 = vpop.f32.mrf.mxu0
    %v487 = vadd.f32 0.0, %v486
    %v488 = vpop.f32.mrf.mxu0
    %v489 = vadd.f32 0.0, %v488
    %490 = vdwg.mxu0
    %491 = vmatpush.bf16.msra.mxu0 0
    %492 = vmatpush.bf16.msra.mxu0 0
    %493 = vmatpush.bf16.msra.mxu0 0
    %494 = vmatpush.bf16.msra.mxu0 0
    %495 = vmatpush.bf16.msra.mxu0 %v400
    %496 = vmatpush.bf16.msra.mxu0 %v395
    %497 = vmatpush.bf16.msra.mxu0 %v390
    %498 = vmatpush.bf16.msra.mxu0 %v385
    %499 = vmatmul.bf16.gmra.mxu0 %v467
    %v500 = vpop.f32.mrf.mxu0
    %v501 = vadd.f32 %v482, %v500
    %v502 = vpop.f32.mrf.mxu0
    %v503 = vadd.f32 %v484, %v502
    %504 = vmatmul.bf16.gmra.mxu0 %v470
    %v505 = vpop.f32.mrf.mxu0
    %v506 = vadd.f32 %v487, %v505
    %v507 = vpop.f32.mrf.mxu0
    %v508 = vadd.f32 %v489, %v507
    %509 = vdwg.mxu0
    %510 = vmatpush.bf16.msra.mxu0 %v381
    %511 = vmatpush.bf16.msra.mxu0 %v376
    %512 = vmatpush.bf16.msra.mxu0 %v371
    %513 = vmatpush.bf16.msra.mxu0 %v366
    %514 = vmatpush.bf16.msra.mxu0 %v361
    %515 = vmatpush.bf16.msra.mxu0 %v356
    %516 = vmatpush.bf16.msra.mxu0 %v351
    %517 = vmatpush.bf16.msra.mxu0 %v346
    %518 = vmatmul.bf16.gmra.mxu0 %v77
    %v519 = vpop.f32.mrf.mxu0
    %v520 = vadd.f32 0.0, %v519
    %v521 = vpop.f32.mrf.mxu0
    %v522 = vadd.f32 0.0, %v521
    %523 = vmatmul.bf16.gmra.mxu0 %v79
    %v524 = vpop.f32.mrf.mxu0
    %v525 = vadd.f32 0.0, %v524
    %v526 = vpop.f32.mrf.mxu0
    %v527 = vadd.f32 0.0, %v526
    %528 = vdwg.mxu0
    %529 = vmatpush.bf16.msra.mxu0 0
    %530 = vmatpush.bf16.msra.mxu0 0
    %531 = vmatpush.bf16.msra.mxu0 0
    %532 = vmatpush.bf16.msra.mxu0 0
    %533 = vmatpush.bf16.msra.mxu0 %v401
    %534 = vmatpush.bf16.msra.mxu0 %v396
    %535 = vmatpush.bf16.msra.mxu0 %v391
    %536 = vmatpush.bf16.msra.mxu0 %v386
    %537 = vmatmul.bf16.gmra.mxu0 %v467
    %v538 = vpop.f32.mrf.mxu0
    %v539 = vadd.f32 %v520, %v538
    %v540 = vpop.f32.mrf.mxu0
    %v541 = vadd.f32 %v522, %v540
    %542 = vmatmul.bf16.gmra.mxu0 %v470
    %v543 = vpop.f32.mrf.mxu0
    %v544 = vadd.f32 %v525, %v543
    %v545 = vpop.f32.mrf.mxu0
    %v546 = vadd.f32 %v527, %v545
    %547 = vdwg.mxu0
    %548 = vmatpush.bf16.msra.mxu0 %v382
    %549 = vmatpush.bf16.msra.mxu0 %v377
    %550 = vmatpush.bf16.msra.mxu0 %v372
    %551 = vmatpush.bf16.msra.mxu0 %v367
    %552 = vmatpush.bf16.msra.mxu0 %v362
    %553 = vmatpush.bf16.msra.mxu0 %v357
    %554 = vmatpush.bf16.msra.mxu0 %v352
    %555 = vmatpush.bf16.msra.mxu0 %v347
    %556 = vmatmul.bf16.gmra.mxu0 %v77
    %v557 = vpop.f32.mrf.mxu0
    %v558 = vadd.f32 0.0, %v557
    %v559 = vpop.f32.mrf.mxu0
    %v560 = vadd.f32 0.0, %v559
    %561 = vmatmul.bf16.gmra.mxu0 %v79
    %v562 = vpop.f32.mrf.mxu0
    %v563 = vadd.f32 0.0, %v562
    %v564 = vpop.f32.mrf.mxu0
    %v565 = vadd.f32 0.0, %v564
    %566 = vdwg.mxu0
    %567 = vmatpush.bf16.msra.mxu0 0
    %568 = vmatpush.bf16.msra.mxu0 0
    %569 = vmatpush.bf16.msra.mxu0 0
    %570 = vmatpush.bf16.msra.mxu0 0
    %571 = vmatpush.bf16.msra.mxu0 %v402
    %572 = vmatpush.bf16.msra.mxu0 %v397
    %573 = vmatpush.bf16.msra.mxu0 %v392
    %574 = vmatpush.bf16.msra.mxu0 %v387
    %575 = vmatmul.bf16.gmra.mxu0 %v467
    %v576 = vpop.f32.mrf.mxu0
    %v577 = vadd.f32 %v558, %v576
    %v578 = vpop.f32.mrf.mxu0
    %v579 = vadd.f32 %v560, %v578
    %580 = vmatmul.bf16.gmra.mxu0 %v470
    %v581 = vpop.f32.mrf.mxu0
    %v582 = vadd.f32 %v563, %v581
    %v583 = vpop.f32.mrf.mxu0
    %v584 = vadd.f32 %v565, %v583
    %585 = vdwg.mxu0
    %586 = vmatpush.bf16.msra.mxu0 %v383
    %587 = vmatpush.bf16.msra.mxu0 %v378
    %588 = vmatpush.bf16.msra.mxu0 %v373
    %589 = vmatpush.bf16.msra.mxu0 %v368
    %590 = vmatpush.bf16.msra.mxu0 %v363
    %591 = vmatpush.bf16.msra.mxu0 %v358
    %592 = vmatpush.bf16.msra.mxu0 %v353
    %593 = vmatpush.bf16.msra.mxu0 %v348
    %594 = vmatmul.bf16.gmra.mxu0 %v77
    %v595 = vpop.f32.mrf.mxu0
    %v596 = vadd.f32 0.0, %v595
    %v597 = vpop.f32.mrf.mxu0
    %v598 = vadd.f32 0.0, %v597
    %599 = vmatmul.bf16.gmra.mxu0 %v79
    %v600 = vpop.f32.mrf.mxu0
    %v601 = vadd.f32 0.0, %v600
    %v602 = vpop.f32.mrf.mxu0
    %v603 = vadd.f32 0.0, %v602
    %604 = vdwg.mxu0
    %605 = vmatpush.bf16.msra.mxu0 0
    %606 = vmatpush.bf16.msra.mxu0 0
    %607 = vmatpush.bf16.msra.mxu0 0
    %608 = vmatpush.bf16.msra.mxu0 0
    %609 = vmatpush.bf16.msra.mxu0 %v403
    %610 = vmatpush.bf16.msra.mxu0 %v398
    %611 = vmatpush.bf16.msra.mxu0 %v393
    %612 = vmatpush.bf16.msra.mxu0 %v388
    %613 = vmatmul.bf16.gmra.mxu0 %v467
    %v614 = vpop.f32.mrf.mxu0
    %v615 = vadd.f32 %v596, %v614
    %v616 = vpop.f32.mrf.mxu0
    %v617 = vadd.f32 %v598, %v616
    %618 = vmatmul.bf16.gmra.mxu0 %v470
    %v619 = vpop.f32.mrf.mxu0
    %v620 = vadd.f32 %v601, %v619
    %v621 = vpop.f32.mrf.mxu0
    %v622 = vadd.f32 %v603, %v621
    %623 = vdwg.mxu0
    %624 = vmatpush.bf16.msra.mxu0 %v384
    %625 = vmatpush.bf16.msra.mxu0 %v379
    %626 = vmatpush.bf16.msra.mxu0 %v374
    %627 = vmatpush.bf16.msra.mxu0 %v369
    %628 = vmatpush.bf16.msra.mxu0 %v364
    %629 = vmatpush.bf16.msra.mxu0 %v359
    %630 = vmatpush.bf16.msra.mxu0 %v354
    %631 = vmatpush.bf16.msra.mxu0 %v349
    %632 = vmatmul.bf16.gmra.mxu0 %v77
    %v633 = vpop.f32.mrf.mxu0
    %v634 = vadd.f32 0.0, %v633
    %v635 = vpop.f32.mrf.mxu0
    %v636 = vadd.f32 0.0, %v635
    %637 = vmatmul.bf16.gmra.mxu0 %v79
    %v638 = vpop.f32.mrf.mxu0
    %v639 = vadd.f32 0.0, %v638
    %v640 = vpop.f32.mrf.mxu0
    %v641 = vadd.f32 0.0, %v640
    %642 = vdwg.mxu0
    %643 = vmatpush.bf16.msra.mxu0 0
    %644 = vmatpush.bf16.msra.mxu0 0
    %645 = vmatpush.bf16.msra.mxu0 0
    %646 = vmatpush.bf16.msra.mxu0 0
    %647 = vmatpush.bf16.msra.mxu0 %v404
    %648 = vmatpush.bf16.msra.mxu0 %v399
    %649 = vmatpush.bf16.msra.mxu0 %v394
    %650 = vmatpush.bf16.msra.mxu0 %v389
    %651 = vmatmul.bf16.gmra.mxu0 %v467
    %v652 = vpop.f32.mrf.mxu0
    %v653 = vadd.f32 %v634, %v652
    %v654 = vpop.f32.mrf.mxu0
    %v655 = vadd.f32 %v636, %v654
    %656 = vmatmul.bf16.gmra.mxu0 %v470
    %v657 = vpop.f32.mrf.mxu0
    %v658 = vadd.f32 %v639, %v657
    %v659 = vpop.f32.mrf.mxu0
    %v660 = vadd.f32 %v641, %v659
    %661 = vdwg.mxu0
    %v662 = vmul.f32 %v501, 0.125
    %v663 = vmul.f32 %v503, 0.125
    %v664 = vpack.c.bf16 %v663, %v662
    %v665 = vpack.c.bf16 %v541, %v539
    %v666 = vpack.c.bf16 %v617, %v615
    %668 = vrot.lane.b32.xlu0 %v665, 64
    %v669 = vpop.permute.xlu0 %668
    %v671 = vsel %vm465, %v664, 0
    %v674 = vsel %vm465, %v669, 0
    %676 = vmatpush.bf16.xpose.msra.mxu0 0
    %677 = vmatpush.bf16.xpose.msra.mxu0 0
    %678 = vmatpush.bf16.xpose.msra.mxu0 0
    %679 = vmatpush.bf16.xpose.msra.mxu0 0
    %680 = vmatpush.bf16.xpose.msra.mxu0 0
    %681 = vmatpush.bf16.xpose.msra.mxu0 0
    %682 = vmatpush.bf16.xpose.msra.mxu0 0
    %683 = vmatpush.bf16.xpose.msra.mxu0 %v674
    %684 = vmatmul.bf16.gmra.mxu0 %v671
    %v685 = vpop.f32.mrf.mxu0
    %v686 = vadd.f32 0.0, %v685
    %v687 = vpop.f32.mrf.mxu0
    %v688 = vadd.f32 0.0, %v687
    %689 = vdwg.mxu0
    %vm690 = vcmask 130048
    %v691 = vsel %vm690, %v686, -inf
    %692 = vmax.xlane.f32.xlu0 %v691
    %v693 = vpop.xlane.xlu0 %692
    %v694 = vsel %vm690, %v688, -inf
    %695 = vmax.xlane.f32.xlu0 %v694
    %v696 = vpop.xlane.xlu0 %695
    %v697 = vsub.f32 %v686, %v693
    %v698 = vsub.f32 %v688, %v696
    %v699 = vmul.f32 %v697, 1.442695
    %v700 = vpow.pop %v699
    %v701 = vmul.f32 %v698, 1.442695
    %v702 = vpow.pop %v701
    %v703 = vsel %vm690, %v700, 0.0
    %704 = vadd.xlane.f32.xlu0 %v703
    %v705 = vpop.xlane.xlu0 %704
    %v706 = vsel %vm690, %v702, 0.0
    %707 = vadd.xlane.f32.xlu0 %v706
    %v708 = vpop.xlane.xlu0 %707
    %v709 = vrcp.pop %v705
    %v710 = vrcp.pop %v708
    %v711 = vmul.f32 %v700, %v709
    %v712 = vmul.f32 %v702, %v710
    %713 = vst.msk [vmem:[#allocation9] sm:$0xff] %vm690, %v711
    %714 = vst.msk [vmem:[#allocation9 + $0x8] sm:$0xff] %vm690, %v712
    %v715 = vpack.c.bf16 %v712, %v711
    %v717 = vsel %vm690, %v715, 0
    %719 = vmatpush.bf16.msra.mxu0 0
    %720 = vmatpush.bf16.msra.mxu0 0
    %721 = vmatpush.bf16.msra.mxu0 0
    %722 = vmatpush.bf16.msra.mxu0 0
    %723 = vmatpush.bf16.msra.mxu0 0
    %724 = vmatpush.bf16.msra.mxu0 0
    %725 = vmatpush.bf16.msra.mxu0 0
    %726 = vmatpush.bf16.msra.mxu0 %v666
    %727 = vmatmul.bf16.gmra.mxu0 %v717
    %v728 = vpop.f32.mrf.mxu0
    %v729 = vadd.f32 0.0, %v728
    %v730 = vpop.f32.mrf.mxu0
    %v731 = vadd.f32 0.0, %v730
    %732 = vdwg.mxu0
    %v733 = vpack.c.bf16 %v579, %v577
    %735 = vrot.lane.b32.xlu0 %v664, 64
    %v736 = vpop.permute.xlu0 %735
    %v738 = vsel %vm465, %v736, 0
    %v741 = vsel %vm465, %v733, 0
    %743 = vmatpush.bf16.xpose.msra.mxu0 0
    %744 = vmatpush.bf16.xpose.msra.mxu0 0
    %745 = vmatpush.bf16.xpose.msra.mxu0 0
    %746 = vmatpush.bf16.xpose.msra.mxu0 0
    %747 = vmatpush.bf16.xpose.msra.mxu0 0
    %748 = vmatpush.bf16.xpose.msra.mxu0 0
    %749 = vmatpush.bf16.xpose.msra.mxu0 0
    %750 = vmatpush.bf16.xpose.msra.mxu0 %v741
    %751 = vmatmul.bf16.gmra.mxu0 %v738
    %v752 = vpop.f32.mrf.mxu0
    %v753 = vadd.f32 0.0, %v752
    %v754 = vpop.f32.mrf.mxu0
    %v755 = vadd.f32 0.0, %v754
    %756 = vdwg.mxu0
    %v757 = vsel %vm690, %v753, -inf
    %758 = vmax.xlane.f32.xlu0 %v757
    %v759 = vpop.xlane.xlu0 %758
    %v760 = vsel %vm690, %v755, -inf
    %761 = vmax.xlane.f32.xlu0 %v760
    %v762 = vpop.xlane.xlu0 %761
    %v763 = vsub.f32 %v753, %v759
    %v764 = vsub.f32 %v755, %v762
    %v765 = vmul.f32 %v763, 1.442695
    %v766 = vpow.pop %v765
    %v767 = vmul.f32 %v764, 1.442695
    %v768 = vpow.pop %v767
    %v769 = vsel %vm690, %v766, 0.0
    %770 = vadd.xlane.f32.xlu0 %v769
    %v771 = vpop.xlane.xlu0 %770
    %v772 = vsel %vm690, %v768, 0.0
    %773 = vadd.xlane.f32.xlu0 %v772
    %v774 = vpop.xlane.xlu0 %773
    %v775 = vrcp.pop %v771
    %v776 = vrcp.pop %v774
    %v777 = vmul.f32 %v766, %v775
    %v778 = vmul.f32 %v768, %v776
    %s779 = scalar_lea.vmem [#allocation9], 16
    %780 = vst.msk [vmem:[%s779] sm:$0xff] %vm690, %v777
    %781 = vst.msk [vmem:[%s779 + $0x8] sm:$0xff] %vm690, %v778
    %v782 = vpack.c.bf16 %v778, %v777
    %784 = vrot.lane.b32.xlu0 %v666, 64
    %v785 = vpop.permute.xlu0 %784
    %v788 = vsel %vm690, %v782, 0
    %790 = vmatpush.bf16.msra.mxu0 0
    %791 = vmatpush.bf16.msra.mxu0 0
    %792 = vmatpush.bf16.msra.mxu0 0
    %793 = vmatpush.bf16.msra.mxu0 0
    %794 = vmatpush.bf16.msra.mxu0 0
    %795 = vmatpush.bf16.msra.mxu0 0
    %796 = vmatpush.bf16.msra.mxu0 0
    %797 = vmatpush.bf16.msra.mxu0 %v785
    %798 = vmatmul.bf16.gmra.mxu0 %v788
    %v799 = vpop.f32.mrf.mxu0
    %v800 = vadd.f32 0.0, %v799
    %v801 = vpop.f32.mrf.mxu0
    %v802 = vadd.f32 0.0, %v801
    %803 = vdwg.mxu0
    %v804 = vmul.f32 %v539, 0.125
    %v805 = vmul.f32 %v541, 0.125
    %v806 = vpack.c.bf16 %v805, %v804
    %v807 = vpack.c.bf16 %v655, %v653
    %809 = vrot.lane.b32.xlu0 %v733, 64
    %v810 = vpop.permute.xlu0 %809
    %v812 = vsel %vm465, %v806, 0
    %v815 = vsel %vm465, %v810, 0
    %817 = vmatpush.bf16.xpose.msra.mxu0 0
    %818 = vmatpush.bf16.xpose.msra.mxu0 0
    %819 = vmatpush.bf16.xpose.msra.mxu0 0
    %820 = vmatpush.bf16.xpose.msra.mxu0 0
    %821 = vmatpush.bf16.xpose.msra.mxu0 0
    %822 = vmatpush.bf16.xpose.msra.mxu0 0
    %823 = vmatpush.bf16.xpose.msra.mxu0 0
    %824 = vmatpush.bf16.xpose.msra.mxu0 %v815
    %825 = vmatmul.bf16.gmra.mxu0 %v812
    %v826 = vpop.f32.mrf.mxu0
    %v827 = vadd.f32 0.0, %v826
    %v828 = vpop.f32.mrf.mxu0
    %v829 = vadd.f32 0.0, %v828
    %830 = vdwg.mxu0
    %v831 = vsel %vm690, %v827, -inf
    %832 = vmax.xlane.f32.xlu0 %v831
    %v833 = vpop.xlane.xlu0 %832
    %v834 = vsel %vm690, %v829, -inf
    %835 = vmax.xlane.f32.xlu0 %v834
    %v836 = vpop.xlane.xlu0 %835
    %v837 = vsub.f32 %v827, %v833
    %v838 = vsub.f32 %v829, %v836
    %v839 = vmul.f32 %v837, 1.442695
    %v840 = vpow.pop %v839
    %v841 = vmul.f32 %v838, 1.442695
    %v842 = vpow.pop %v841
    %v843 = vsel %vm690, %v840, 0.0
    %844 = vadd.xlane.f32.xlu0 %v843
    %v845 = vpop.xlane.xlu0 %844
    %v846 = vsel %vm690, %v842, 0.0
    %847 = vadd.xlane.f32.xlu0 %v846
    %v848 = vpop.xlane.xlu0 %847
    %v849 = vrcp.pop %v845
    %v850 = vrcp.pop %v848
    %v851 = vmul.f32 %v840, %v849
    %v852 = vmul.f32 %v842, %v850
    %s853 = scalar_lea.vmem [#allocation9], 32
    %854 = vst.msk [vmem:[%s853] sm:$0xff] %vm690, %v851
    %855 = vst.msk [vmem:[%s853 + $0x8] sm:$0xff] %vm690, %v852
    %v856 = vpack.c.bf16 %v852, %v851
    %v858 = vsel %vm690, %v856, 0
    %860 = vmatpush.bf16.msra.mxu0 0
    %861 = vmatpush.bf16.msra.mxu0 0
    %862 = vmatpush.bf16.msra.mxu0 0
    %863 = vmatpush.bf16.msra.mxu0 0
    %864 = vmatpush.bf16.msra.mxu0 0
    %865 = vmatpush.bf16.msra.mxu0 0
    %866 = vmatpush.bf16.msra.mxu0 0
    %867 = vmatpush.bf16.msra.mxu0 %v807
    %868 = vmatmul.bf16.gmra.mxu0 %v858
    %v869 = vpop.f32.mrf.mxu0
    %v870 = vadd.f32 0.0, %v869
    %v871 = vpop.f32.mrf.mxu0
    %v872 = vadd.f32 0.0, %v871
    %873 = vdwg.mxu0
    %876 = vrot.lane.b32.xlu0 %v800, 64
    %v877 = vpop.permute.xlu0 %876
    %878 = vrot.lane.b32.xlu0 %v802, 64
    %v879 = vpop.permute.xlu0 %878
    %v882 = vsel %vm465, %v729, %v877
    %v883 = vsel %vm465, %v731, %v879
    %v884 = vmul.f32 %v506, 0.125
    %v885 = vmul.f32 %v508, 0.125
    %v886 = vpack.c.bf16 %v885, %v884
    %v887 = vpack.c.bf16 %v546, %v544
    %v888 = vpack.c.bf16 %v622, %v620
    %890 = vrot.lane.b32.xlu0 %v887, 64
    %v891 = vpop.permute.xlu0 %890
    %v893 = vsel %vm465, %v886, 0
    %v896 = vsel %vm465, %v891, 0
    %898 = vmatpush.bf16.xpose.msra.mxu0 0
    %899 = vmatpush.bf16.xpose.msra.mxu0 0
    %900 = vmatpush.bf16.xpose.msra.mxu0 0
    %901 = vmatpush.bf16.xpose.msra.mxu0 0
    %902 = vmatpush.bf16.xpose.msra.mxu0 0
    %903 = vmatpush.bf16.xpose.msra.mxu0 0
    %904 = vmatpush.bf16.xpose.msra.mxu0 0
    %905 = vmatpush.bf16.xpose.msra.mxu0 %v896
    %906 = vmatmul.bf16.gmra.mxu0 %v893
    %v907 = vpop.f32.mrf.mxu0
    %v908 = vadd.f32 0.0, %v907
    %v909 = vpop.f32.mrf.mxu0
    %v910 = vadd.f32 0.0, %v909
    %911 = vdwg.mxu0
    %v912 = vsel %vm690, %v908, -inf
    %913 = vmax.xlane.f32.xlu0 %v912
    %v914 = vpop.xlane.xlu0 %913
    %v915 = vsel %vm690, %v910, -inf
    %916 = vmax.xlane.f32.xlu0 %v915
    %v917 = vpop.xlane.xlu0 %916
    %v918 = vsub.f32 %v908, %v914
    %v919 = vsub.f32 %v910, %v917
    %v920 = vmul.f32 %v918, 1.442695
    %v921 = vpow.pop %v920
    %v922 = vmul.f32 %v919, 1.442695
    %v923 = vpow.pop %v922
    %v924 = vsel %vm690, %v921, 0.0
    %925 = vadd.xlane.f32.xlu0 %v924
    %v926 = vpop.xlane.xlu0 %925
    %v927 = vsel %vm690, %v923, 0.0
    %928 = vadd.xlane.f32.xlu0 %v927
    %v929 = vpop.xlane.xlu0 %928
    %v930 = vrcp.pop %v926
    %v931 = vrcp.pop %v929
    %v932 = vmul.f32 %v921, %v930
    %v933 = vmul.f32 %v923, %v931
    %s934 = scalar_lea.vmem [#allocation9], 48
    %935 = vst.msk [vmem:[%s934] sm:$0xff] %vm690, %v932
    %936 = vst.msk [vmem:[%s934 + $0x8] sm:$0xff] %vm690, %v933
    %v937 = vpack.c.bf16 %v933, %v932
    %v939 = vsel %vm690, %v937, 0
    %941 = vmatpush.bf16.msra.mxu0 0
    %942 = vmatpush.bf16.msra.mxu0 0
    %943 = vmatpush.bf16.msra.mxu0 0
    %944 = vmatpush.bf16.msra.mxu0 0
    %945 = vmatpush.bf16.msra.mxu0 0
    %946 = vmatpush.bf16.msra.mxu0 0
    %947 = vmatpush.bf16.msra.mxu0 0
    %948 = vmatpush.bf16.msra.mxu0 %v888
    %949 = vmatmul.bf16.gmra.mxu0 %v939
    %v950 = vpop.f32.mrf.mxu0
    %v951 = vadd.f32 0.0, %v950
    %v952 = vpop.f32.mrf.mxu0
    %v953 = vadd.f32 0.0, %v952
    %954 = vdwg.mxu0
    %v955 = vpack.c.bf16 %v584, %v582
    %957 = vrot.lane.b32.xlu0 %v886, 64
    %v958 = vpop.permute.xlu0 %957
    %v960 = vsel %vm465, %v958, 0
    %v963 = vsel %vm465, %v955, 0
    %965 = vmatpush.bf16.xpose.msra.mxu0 0
    %966 = vmatpush.bf16.xpose.msra.mxu0 0
    %967 = vmatpush.bf16.xpose.msra.mxu0 0
    %968 = vmatpush.bf16.xpose.msra.mxu0 0
    %969 = vmatpush.bf16.xpose.msra.mxu0 0
    %970 = vmatpush.bf16.xpose.msra.mxu0 0
    %971 = vmatpush.bf16.xpose.msra.mxu0 0
    %972 = vmatpush.bf16.xpose.msra.mxu0 %v963
    %973 = vmatmul.bf16.gmra.mxu0 %v960
    %v974 = vpop.f32.mrf.mxu0
    %v975 = vadd.f32 0.0, %v974
    %v976 = vpop.f32.mrf.mxu0
    %v977 = vadd.f32 0.0, %v976
    %978 = vdwg.mxu0
    %v979 = vsel %vm690, %v975, -inf
    %980 = vmax.xlane.f32.xlu0 %v979
    %v981 = vpop.xlane.xlu0 %980
    %v982 = vsel %vm690, %v977, -inf
    %983 = vmax.xlane.f32.xlu0 %v982
    %v984 = vpop.xlane.xlu0 %983
    %v985 = vsub.f32 %v975, %v981
    %v986 = vsub.f32 %v977, %v984
    %v987 = vmul.f32 %v985, 1.442695
    %v988 = vpow.pop %v987
    %v989 = vmul.f32 %v986, 1.442695
    %v990 = vpow.pop %v989
    %v991 = vsel %vm690, %v988, 0.0
    %992 = vadd.xlane.f32.xlu0 %v991
    %v993 = vpop.xlane.xlu0 %992
    %v994 = vsel %vm690, %v990, 0.0
    %995 = vadd.xlane.f32.xlu0 %v994
    %v996 = vpop.xlane.xlu0 %995
    %v997 = vrcp.pop %v993
    %v998 = vrcp.pop %v996
    %v999 = vmul.f32 %v988, %v997
    %v1000 = vmul.f32 %v990, %v998
    %s1001 = scalar_lea.vmem [#allocation9], 64
    %1002 = vst.msk [vmem:[%s1001] sm:$0xff] %vm690, %v999
    %1003 = vst.msk [vmem:[%s1001 + $0x8] sm:$0xff] %vm690, %v1000
    %v1004 = vpack.c.bf16 %v1000, %v999
    %1006 = vrot.lane.b32.xlu0 %v888, 64
    %v1007 = vpop.permute.xlu0 %1006
    %v1010 = vsel %vm690, %v1004, 0
    %1012 = vmatpush.bf16.msra.mxu0 0
    %1013 = vmatpush.bf16.msra.mxu0 0
    %1014 = vmatpush.bf16.msra.mxu0 0
    %1015 = vmatpush.bf16.msra.mxu0 0
    %1016 = vmatpush.bf16.msra.mxu0 0
    %1017 = vmatpush.bf16.msra.mxu0 0
    %1018 = vmatpush.bf16.msra.mxu0 0
    %1019 = vmatpush.bf16.msra.mxu0 %v1007
    %1020 = vmatmul.bf16.gmra.mxu0 %v1010
    %v1021 = vpop.f32.mrf.mxu0
    %v1022 = vadd.f32 0.0, %v1021
    %v1023 = vpop.f32.mrf.mxu0
    %v1024 = vadd.f32 0.0, %v1023
    %1025 = vdwg.mxu0
    %v1026 = vmul.f32 %v544, 0.125
    %v1027 = vmul.f32 %v546, 0.125
    %v1028 = vpack.c.bf16 %v1027, %v1026
    %v1029 = vpack.c.bf16 %v660, %v658
    %1031 = vrot.lane.b32.xlu0 %v955, 64
    %v1032 = vpop.permute.xlu0 %1031
    %v1034 = vsel %vm465, %v1028, 0
    %v1037 = vsel %vm465, %v1032, 0
    %1039 = vmatpush.bf16.xpose.msra.mxu0 0
    %1040 = vmatpush.bf16.xpose.msra.mxu0 0
    %1041 = vmatpush.bf16.xpose.msra.mxu0 0
    %1042 = vmatpush.bf16.xpose.msra.mxu0 0
    %1043 = vmatpush.bf16.xpose.msra.mxu0 0
    %1044 = vmatpush.bf16.xpose.msra.mxu0 0
    %1045 = vmatpush.bf16.xpose.msra.mxu0 0
    %1046 = vmatpush.bf16.xpose.msra.mxu0 %v1037
    %1047 = vmatmul.bf16.gmra.mxu0 %v1034
    %v1048 = vpop.f32.mrf.mxu0
    %v1049 = vadd.f32 0.0, %v1048
    %v1050 = vpop.f32.mrf.mxu0
    %v1051 = vadd.f32 0.0, %v1050
    %1052 = vdwg.mxu0
    %v1053 = vsel %vm690, %v1049, -inf
    %1054 = vmax.xlane.f32.xlu0 %v1053
    %v1055 = vpop.xlane.xlu0 %1054
    %v1056 = vsel %vm690, %v1051, -inf
    %1057 = vmax.xlane.f32.xlu0 %v1056
    %v1058 = vpop.xlane.xlu0 %1057
    %v1059 = vsub.f32 %v1049, %v1055
    %v1060 = vsub.f32 %v1051, %v1058
    %v1061 = vmul.f32 %v1059, 1.442695
    %v1062 = vpow.pop %v1061
    %v1063 = vmul.f32 %v1060, 1.442695
    %v1064 = vpow.pop %v1063
    %v1065 = vsel %vm690, %v1062, 0.0
    %1066 = vadd.xlane.f32.xlu0 %v1065
    %v1067 = vpop.xlane.xlu0 %1066
    %v1068 = vsel %vm690, %v1064, 0.0
    %1069 = vadd.xlane.f32.xlu0 %v1068
    %v1070 = vpop.xlane.xlu0 %1069
    %v1071 = vrcp.pop %v1067
    %v1072 = vrcp.pop %v1070
    %v1073 = vmul.f32 %v1062, %v1071
    %v1074 = vmul.f32 %v1064, %v1072
    %s1075 = scalar_lea.vmem [#allocation9], 80
    %1076 = vst.msk [vmem:[%s1075] sm:$0xff] %vm690, %v1073
    %1077 = vst.msk [vmem:[%s1075 + $0x8] sm:$0xff] %vm690, %v1074
    %v1078 = vpack.c.bf16 %v1074, %v1073
    %v1080 = vsel %vm690, %v1078, 0
    %1082 = vmatpush.bf16.msra.mxu0 0
    %1083 = vmatpush.bf16.msra.mxu0 0
    %1084 = vmatpush.bf16.msra.mxu0 0
    %1085 = vmatpush.bf16.msra.mxu0 0
    %1086 = vmatpush.bf16.msra.mxu0 0
    %1087 = vmatpush.bf16.msra.mxu0 0
    %1088 = vmatpush.bf16.msra.mxu0 0
    %1089 = vmatpush.bf16.msra.mxu0 %v1029
    %1090 = vmatmul.bf16.gmra.mxu0 %v1080
    %v1091 = vpop.f32.mrf.mxu0
    %v1092 = vadd.f32 0.0, %v1091
    %v1093 = vpop.f32.mrf.mxu0
    %v1094 = vadd.f32 0.0, %v1093
    %1095 = vdwg.mxu0
    %1098 = vrot.lane.b32.xlu0 %v1022, 64
    %v1099 = vpop.permute.xlu0 %1098
    %1100 = vrot.lane.b32.xlu0 %v1024, 64
    %v1101 = vpop.permute.xlu0 %1100
    %v1104 = vsel %vm465, %v951, %v1099
    %v1105 = vsel %vm465, %v953, %v1101
    %v1106 = vpack.c.bf16 %v883, %v882
    %v1107 = vpack.c.bf16 %v872, %v870
    %v1108 = vpack.c.bf16 %v1105, %v1104
    %v1109 = vpack.c.bf16 %v1094, %v1092
    %v1110 = vld [vmem:[#allocation7] sm:$0xff]
    %v1111 = vld [vmem:[#allocation7 + $0x8] sm:$0xff]
    %v1112 = vld [vmem:[#allocation7 + $0x10] sm:$0xff]
    %v1113 = vld [vmem:[#allocation7 + $0x18] sm:$0xff]
    %v1114 = vld [vmem:[#allocation7 + $0x20] sm:$0xff]
    %v1115 = vld [vmem:[#allocation7 + $0x28] sm:$0xff]
    %v1116 = vld [vmem:[#allocation7 + $0x30] sm:$0xff]
    %v1117 = vld [vmem:[#allocation7 + $0x38] sm:$0xff]
    %v1118 = vld [vmem:[#allocation7 + $0x40] sm:$0xff]
    %v1119 = vld [vmem:[#allocation7 + $0x48] sm:$0xff]
    %v1120 = vld [vmem:[#allocation7 + $0x50] sm:$0xff]
    %v1121 = vld [vmem:[#allocation7 + $0x58] sm:$0xff]
    %v1122 = vld [vmem:[#allocation7 + $0x60] sm:$0xff]
    %v1123 = vld [vmem:[#allocation7 + $0x68] sm:$0xff]
    %v1124 = vld [vmem:[#allocation7 + $0x70] sm:$0xff]
    %v1125 = vld [vmem:[#allocation7 + $0x78] sm:$0xff]
    %v1126 = vld [vmem:[#allocation7 + $0x80] sm:$0xff]
    %v1127 = vld [vmem:[#allocation7 + $0x88] sm:$0xff]
    %v1128 = vld [vmem:[#allocation7 + $0x90] sm:$0xff]
    %v1129 = vld [vmem:[#allocation7 + $0x98] sm:$0xff]
    %v1130 = vld [vmem:[#allocation7 + $0xa0] sm:$0xff]
    %v1131 = vld [vmem:[#allocation7 + $0xa8] sm:$0xff]
    %v1132 = vld [vmem:[#allocation7 + $0xb0] sm:$0xff]
    %v1133 = vld [vmem:[#allocation7 + $0xb8] sm:$0xff]
    %v1134 = vld [vmem:[%s3] sm:$0x3]
    %v1136 = vperm.slane %v1134, 0
    %v1137 = vperm.slane %v1134, 1
    %v1164 = vunpack.c.l.b16 %v1110
    %v1165 = vunpack.c.h.b16 %v1110
    %v1166 = vunpack.c.l.b16 %v1111
    %v1167 = vunpack.c.h.b16 %v1111
    %v1168 = vunpack.c.l.b16 %v1112
    %v1169 = vunpack.c.h.b16 %v1112
    %v1170 = vunpack.c.l.b16 %v1113
    %v1171 = vunpack.c.h.b16 %v1113
    %v1172 = vunpack.c.l.b16 %v1114
    %v1173 = vunpack.c.h.b16 %v1114
    %v1174 = vunpack.c.l.b16 %v1115
    %v1175 = vunpack.c.h.b16 %v1115
    %v1176 = vunpack.c.l.b16 %v1116
    %v1177 = vunpack.c.h.b16 %v1116
    %v1178 = vunpack.c.l.b16 %v1117
    %v1179 = vunpack.c.h.b16 %v1117
    %v1180 = vunpack.c.l.b16 %v1118
    %v1181 = vunpack.c.h.b16 %v1118
    %v1182 = vunpack.c.l.b16 %v1119
    %v1183 = vunpack.c.h.b16 %v1119
    %v1184 = vunpack.c.l.b16 %v1120
    %v1185 = vunpack.c.h.b16 %v1120
    %v1186 = vunpack.c.l.b16 %v1121
    %v1187 = vunpack.c.h.b16 %v1121
    %v1188 = vunpack.c.l.b16 %v1122
    %v1189 = vunpack.c.h.b16 %v1122
    %v1190 = vunpack.c.l.b16 %v1123
    %v1191 = vunpack.c.h.b16 %v1123
    %v1192 = vunpack.c.l.b16 %v1124
    %v1193 = vunpack.c.h.b16 %v1124
    %v1194 = vunpack.c.l.b16 %v1125
    %v1195 = vunpack.c.h.b16 %v1125
    %v1196 = vunpack.c.l.b16 %v1126
    %v1197 = vunpack.c.h.b16 %v1126
    %v1198 = vunpack.c.l.b16 %v1127
    %v1199 = vunpack.c.h.b16 %v1127
    %v1200 = vunpack.c.l.b16 %v1128
    %v1201 = vunpack.c.h.b16 %v1128
    %v1202 = vunpack.c.l.b16 %v1129
    %v1203 = vunpack.c.h.b16 %v1129
    %v1204 = vunpack.c.l.b16 %v1130
    %v1205 = vunpack.c.h.b16 %v1130
    %v1206 = vunpack.c.l.b16 %v1131
    %v1207 = vunpack.c.h.b16 %v1131
    %v1208 = vunpack.c.l.b16 %v1132
    %v1209 = vunpack.c.h.b16 %v1132
    %v1210 = vunpack.c.l.b16 %v1133
    %v1211 = vunpack.c.h.b16 %v1133
    %v1212 = vpack.c.b16 %v1166, %v1164
    %v1213 = vpack.c.b16 %v1167, %v1165
    %v1214 = vpack.c.b16 %v1170, %v1168
    %v1215 = vpack.c.b16 %v1171, %v1169
    %v1216 = vpack.c.b16 %v1174, %v1172
    %v1217 = vpack.c.b16 %v1175, %v1173
    %v1218 = vpack.c.b16 %v1178, %v1176
    %v1219 = vpack.c.b16 %v1179, %v1177
    %v1220 = vpack.c.b16 %v1182, %v1180
    %v1221 = vpack.c.b16 %v1183, %v1181
    %v1222 = vpack.c.b16 %v1186, %v1184
    %v1223 = vpack.c.b16 %v1187, %v1185
    %v1224 = vpack.c.b16 %v1190, %v1188
    %v1225 = vpack.c.b16 %v1191, %v1189
    %v1226 = vpack.c.b16 %v1194, %v1192
    %v1227 = vpack.c.b16 %v1195, %v1193
    %v1228 = vpack.c.b16 %v1198, %v1196
    %v1229 = vpack.c.b16 %v1199, %v1197
    %v1230 = vpack.c.b16 %v1202, %v1200
    %v1231 = vpack.c.b16 %v1203, %v1201
    %v1232 = vpack.c.b16 %v1206, %v1204
    %v1233 = vpack.c.b16 %v1207, %v1205
    %v1234 = vpack.c.b16 %v1210, %v1208
    %v1235 = vpack.c.b16 %v1211, %v1209
    %v1261 = vsel %vm465, %v1107, 0
    %v1264 = vsel %vm465, %v1109, 0
    %1266 = vmatpush.bf16.msra.mxu0 %v1226
    %1267 = vmatpush.bf16.msra.mxu0 %v1224
    %1268 = vmatpush.bf16.msra.mxu0 %v1222
    %1269 = vmatpush.bf16.msra.mxu0 %v1220
    %1270 = vmatpush.bf16.msra.mxu0 %v1218
    %1271 = vmatpush.bf16.msra.mxu0 %v1216
    %1272 = vmatpush.bf16.msra.mxu0 %v1214
    %1273 = vmatpush.bf16.msra.mxu0 %v1212
    %1274 = vmatmul.bf16.gmra.mxu0 %v1106
    %v1275 = vpop.f32.mrf.mxu0
    %v1276 = vadd.f32 %v1136, %v1275
    %v1277 = vpop.f32.mrf.mxu0
    %v1278 = vadd.f32 %v1136, %v1277
    %1279 = vmatmul.bf16.gmra.mxu0 %v1108
    %v1280 = vpop.f32.mrf.mxu0
    %v1281 = vadd.f32 %v1136, %v1280
    %v1282 = vpop.f32.mrf.mxu0
    %v1283 = vadd.f32 %v1136, %v1282
    %1284 = vdwg.mxu0
    %1285 = vmatpush.bf16.msra.mxu0 0
    %1286 = vmatpush.bf16.msra.mxu0 0
    %1287 = vmatpush.bf16.msra.mxu0 0
    %1288 = vmatpush.bf16.msra.mxu0 0
    %1289 = vmatpush.bf16.msra.mxu0 %v1234
    %1290 = vmatpush.bf16.msra.mxu0 %v1232
    %1291 = vmatpush.bf16.msra.mxu0 %v1230
    %1292 = vmatpush.bf16.msra.mxu0 %v1228
    %1293 = vmatmul.bf16.gmra.mxu0 %v1261
    %v1294 = vpop.f32.mrf.mxu0
    %v1295 = vadd.f32 %v1276, %v1294
    %v1296 = vpop.f32.mrf.mxu0
    %v1297 = vadd.f32 %v1278, %v1296
    %1298 = vmatmul.bf16.gmra.mxu0 %v1264
    %v1299 = vpop.f32.mrf.mxu0
    %v1300 = vadd.f32 %v1281, %v1299
    %v1301 = vpop.f32.mrf.mxu0
    %v1302 = vadd.f32 %v1283, %v1301
    %1303 = vdwg.mxu0
    %1304 = vmatpush.bf16.msra.mxu0 %v1227
    %1305 = vmatpush.bf16.msra.mxu0 %v1225
    %1306 = vmatpush.bf16.msra.mxu0 %v1223
    %1307 = vmatpush.bf16.msra.mxu0 %v1221
    %1308 = vmatpush.bf16.msra.mxu0 %v1219
    %1309 = vmatpush.bf16.msra.mxu0 %v1217
    %1310 = vmatpush.bf16.msra.mxu0 %v1215
    %1311 = vmatpush.bf16.msra.mxu0 %v1213
    %1312 = vmatmul.bf16.gmra.mxu0 %v1106
    %v1313 = vpop.f32.mrf.mxu0
    %v1314 = vadd.f32 %v1137, %v1313
    %v1315 = vpop.f32.mrf.mxu0
    %v1316 = vadd.f32 %v1137, %v1315
    %1317 = vmatmul.bf16.gmra.mxu0 %v1108
    %v1318 = vpop.f32.mrf.mxu0
    %v1319 = vadd.f32 %v1137, %v1318
    %v1320 = vpop.f32.mrf.mxu0
    %v1321 = vadd.f32 %v1137, %v1320
    %1322 = vdwg.mxu0
    %1323 = vmatpush.bf16.msra.mxu0 0
    %1324 = vmatpush.bf16.msra.mxu0 0
    %1325 = vmatpush.bf16.msra.mxu0 0
    %1326 = vmatpush.bf16.msra.mxu0 0
    %1327 = vmatpush.bf16.msra.mxu0 %v1235
    %1328 = vmatpush.bf16.msra.mxu0 %v1233
    %1329 = vmatpush.bf16.msra.mxu0 %v1231
    %1330 = vmatpush.bf16.msra.mxu0 %v1229
    %1331 = vmatmul.bf16.gmra.mxu0 %v1261
    %v1332 = vpop.f32.mrf.mxu0
    %v1333 = vadd.f32 %v1314, %v1332
    %v1334 = vpop.f32.mrf.mxu0
    %v1335 = vadd.f32 %v1316, %v1334
    %1336 = vmatmul.bf16.gmra.mxu0 %v1264
    %v1337 = vpop.f32.mrf.mxu0
    %v1338 = vadd.f32 %v1319, %v1337
    %v1339 = vpop.f32.mrf.mxu0
    %v1340 = vadd.f32 %v1321, %v1339
    %1341 = vdwg.mxu0
    %1342 = vst [vmem:[#allocation8] sm:$0xff] %v1295
    %1343 = vst.msk [vmem:[#allocation8 + $0x8] sm:$0xff] %vm465, %v1333
    %1344 = vst [vmem:[#allocation8 + $0x10] sm:$0xff] %v1297
    %1345 = vst.msk [vmem:[#allocation8 + $0x18] sm:$0xff] %vm465, %v1335
    %1346 = vst [vmem:[#allocation8 + $0x20] sm:$0xff] %v1300
    %1347 = vst.msk [vmem:[#allocation8 + $0x28] sm:$0xff] %vm465, %v1338
    %1348 = vst [vmem:[#allocation8 + $0x30] sm:$0xff] %v1302
    %1349 = vst.msk [vmem:[#allocation8 + $0x38] sm:$0xff] %vm465, %v1340
    // Predicated region
    $region30: #{tpu_custom_call.1} parent=1 // pred_check
      _
    $region31: #{tpu_custom_call.1} parent=1 // pred_check_branch
      %1351 = sbr.rel (0) target = $region33
    $region32: #{tpu_custom_call.1} parent=1 // pred_region
      %1353 = vsyncadd [#allocation4], 0
      %s1354 = sshll.u32 [#allocation8], 4
      %s1355 = int_to_ptr.vmem [resolvable:$true] %s1354
      %s1356 = sshll.u32 %s4, 4
      %s1357 = int_to_ptr.hbm [resolvable:$true] %s1356
      %1362 = dma.vmem_to_hbm [thread:$0]  %s1355, 1024, %s1357, [#allocation4], 256, 256, 16
    $region33: #{tpu_custom_call.1} parent=1 // pred_fallthru
      _
    // Predicated region
    $region34: #{tpu_custom_call.1} parent=1 // pred_check
      _
    $region35: #{tpu_custom_call.1} parent=1 // pred_check_branch
      %1364 = sbr.rel (0) target = $region37
    $region36: #{tpu_custom_call.1} parent=1 // pred_region
      %1366 = vsyncadd [#allocation10], 0
      %s1367 = sshll.u32 [#allocation9], 4
      %s1368 = int_to_ptr.vmem [resolvable:$true] %s1367
      %s1369 = sshll.u32 %s5, 4
      %s1370 = int_to_ptr.hbm [resolvable:$true] %s1369
      %1375 = dma.vmem_to_hbm [thread:$0]  %s1368, 1536, %s1370, [#allocation10], 128, 128, 8
    $region37: #{tpu_custom_call.1} parent=1 // pred_fallthru
      _
    // Predicated region
    $region38: #{tpu_custom_call.1} parent=1 // pred_check
      _
    $region39: #{tpu_custom_call.1} parent=1 // pred_check_branch
      %1377 = sbr.rel (0) target = $region41
    $region40: #{tpu_custom_call.1} parent=1 // pred_region
      %1379 = dma.done [#allocation4], 1024
    $region41: #{tpu_custom_call.1} parent=1 // pred_fallthru
      _
    // Predicated region
    $region42: #{tpu_custom_call.1} parent=1 // pred_check
      _
    $region43: #{tpu_custom_call.1} parent=1 // pred_check_branch
      %1381 = sbr.rel (0) target = $region45
    $region44: #{tpu_custom_call.1} parent=1 // pred_region
      %1383 = dma.done [#allocation10], 1536
    $region45: #{tpu_custom_call.1} parent=1 // pred_fallthru
      _
    %1384 = vsyncpa [#allocation3], 1
    %1385 = vsyncpa [#allocation6], 1
    %1386 = vsyncpa [#allocation4], 1
    %1387 = vsyncpa [#allocation10], 1

</llo_original>
